<compile_context>
chip_gen: v6e
topology: v6e:2x2x1
jax: 0.10.0
libtpu: 0.0.40
codegen_flags: <defaults>
</compile_context>

<pallas_src>
import functools

import jax
import jax.numpy as jnp
from jax.experimental import pallas as pl
from jax.experimental.pallas import tpu as pltpu


def _round_up(x, m):
    return ((x + m - 1) // m) * m


def attn_decoder_kernel(
    x_ref, h_ref, enc_ref,
    wg_ref, bg_ref,            # fused GRU weights (2Hp,4Hp) bf16 / bias (1,4Hp) f32
    wc_ref, bc_ref,            # fused concat Linear (2Hp,Hp) bf16 / bias (1,Hp) f32
    wo_ref, bo_ref,            # output projection tile (Hp,TV) bf16 / bias tile (1,TV) f32
    out_ref, hid_ref,          # outputs: probs (Bp,Vp) f32, new hidden (Bp,Hp) f32
    c_scr, logit_scr,          # VMEM scratch: concat output (Bp,Hp), logits (nv,Bp,TV)
):
    j = pl.program_id(0)
    Hp = h_ref.shape[1]
    nv = logit_scr.shape[0]
    tv = wo_ref.shape[1]

    # ---- step state (GRU + attention + concat) computed once, on the first vocab tile ----
    @pl.when(j == 0)
    def _compute_state():
        x = x_ref[...]                      # (Bp, Hp) embedded token (dropout = identity, eval)
        h = h_ref[...]                      # (Bp, Hp) previous hidden (n_layers = 1)

        # Single fused GRU matmul: [x | h] @ [[Wir Wiz Win 0],[Whr Whz 0 Whn]]  (bf16 -> f32 acc)
        xh = jnp.concatenate([x, h], axis=-1).astype(jnp.bfloat16)        # (Bp, 2Hp)
        g = jnp.dot(xh, wg_ref[...], preferred_element_type=jnp.float32) + bg_ref[...]
        r = jax.nn.sigmoid(g[:, 0 * Hp:1 * Hp])
        z = jax.nn.sigmoid(g[:, 1 * Hp:2 * Hp])
        n = jnp.tanh(g[:, 2 * Hp:3 * Hp] + r * g[:, 3 * Hp:4 * Hp])
        h_new = (1.0 - z) * n + z * h                                     # (Bp, Hp) f32
        hid_ref[...] = h_new

        # Dot-attention on the MXU: energies over H, softmax over L, context over L.
        enc = enc_ref[...]                                                # (Bp, L, Hp) bf16
        hq = h_new.astype(jnp.bfloat16)[:, None, :]                       # (Bp, 1, Hp)
        e = jnp.einsum("bqh,blh->bql", hq, enc,
                       preferred_element_type=jnp.float32)[:, 0, :]       # (Bp, L)
        e = e - jnp.max(e, axis=-1, keepdims=True)
        pe = jnp.exp(e)
        aw = pe * pl.reciprocal(jnp.sum(pe, axis=-1, keepdims=True), approx=True)
        ctx = jnp.einsum("bql,blh->bqh", aw.astype(jnp.bfloat16)[:, None, :], enc,
                         preferred_element_type=jnp.float32)[:, 0, :]     # (Bp, Hp)

        # Fused concat Linear: [h_new | ctx] @ [Wc_rnn ; Wc_ctx], tanh.
        hc = jnp.concatenate([h_new, ctx], axis=-1).astype(jnp.bfloat16)  # (Bp, 2Hp)
        c_scr[...] = jnp.tanh(
            jnp.dot(hc, wc_ref[...], preferred_element_type=jnp.float32) + bc_ref[...])

    # ---- V-tiled output projection: one (Bp,Hp)@(Hp,TV) matmul per grid step ----
    logits = jnp.dot(c_scr[...].astype(jnp.bfloat16), wo_ref[...],
                     preferred_element_type=jnp.float32) + bo_ref[...]    # (Bp, TV)
    logit_scr[j] = logits

    # ---- exact softmax over the full (padded) vocab once all tiles are staged ----
    @pl.when(j == nv - 1)
    def _finalize():
        lg = logit_scr[...]                                               # (nv, Bp, TV)
        m = jnp.max(jnp.max(lg, axis=2, keepdims=True), axis=0, keepdims=True)
        p = jnp.exp(lg - m)
        s = jnp.sum(jnp.sum(p, axis=2, keepdims=True), axis=0, keepdims=True)
        probs = p * pl.reciprocal(s, approx=True)                         # (nv, Bp, TV)
        for jj in range(nv):                                              # static unroll
            out_ref[:, jj * tv:(jj + 1) * tv] = probs[jj]


def init_params(key, hidden_size, output_size):
    ks = jax.random.split(key, 18)
    H, V = hidden_size, output_size
    s = 0.1
    return {
        "embedding": s * jax.random.normal(ks[0], (V, H), jnp.float32),
        # GRU weights, stored transposed (x @ W), split per gate (PyTorch convention)
        "wir": s * jax.random.normal(ks[1], (H, H), jnp.float32),
        "wiz": s * jax.random.normal(ks[2], (H, H), jnp.float32),
        "win": s * jax.random.normal(ks[3], (H, H), jnp.float32),
        "whr": s * jax.random.normal(ks[4], (H, H), jnp.float32),
        "whz": s * jax.random.normal(ks[5], (H, H), jnp.float32),
        "whn": s * jax.random.normal(ks[6], (H, H), jnp.float32),
        "bir": s * jax.random.normal(ks[7], (1, H), jnp.float32),
        "biz": s * jax.random.normal(ks[8], (1, H), jnp.float32),
        "bin": s * jax.random.normal(ks[9], (1, H), jnp.float32),
        "bhr": s * jax.random.normal(ks[10], (1, H), jnp.float32),
        "bhz": s * jax.random.normal(ks[11], (1, H), jnp.float32),
        "bhn": s * jax.random.normal(ks[12], (1, H), jnp.float32),
        # concat Linear (2H -> H), split into the rnn-output half and the context half
        "wc_rnn": s * jax.random.normal(ks[13], (H, H), jnp.float32),
        "wc_ctx": s * jax.random.normal(ks[14], (H, H), jnp.float32),
        "bc": s * jax.random.normal(ks[15], (1, H), jnp.float32),
        # out Linear (H -> V)
        "wo": s * jax.random.normal(ks[16], (H, V), jnp.float32),
        "bo": s * jax.random.normal(ks[17], (1, V), jnp.float32),
    }


def pack_params(params, hidden_size, output_size, tile_v=128):
    """Pad / fuse the logical parameters into MXU- and lane-aligned kernel operands."""
    H, V = hidden_size, output_size
    Hp = _round_up(H, 128)
    Vp = _round_up(V, tile_v)
    f32, bf16 = jnp.float32, jnp.bfloat16

    wg = jnp.zeros((2 * Hp, 4 * Hp), f32)
    wg = wg.at[:H, 0 * Hp:0 * Hp + H].set(params["wir"])
    wg = wg.at[:H, 1 * Hp:1 * Hp + H].set(params["wiz"])
    wg = wg.at[:H, 2 * Hp:2 * Hp + H].set(params["win"])
    wg = wg.at[Hp:Hp + H, 0 * Hp:0 * Hp + H].set(params["whr"])
    wg = wg.at[Hp:Hp + H, 1 * Hp:1 * Hp + H].set(params["whz"])
    wg = wg.at[Hp:Hp + H, 3 * Hp:3 * Hp + H].set(params["whn"])
    bg = jnp.zeros((1, 4 * Hp), f32)
    bg = bg.at[:, 0 * Hp:0 * Hp + H].set(params["bir"] + params["bhr"])
    bg = bg.at[:, 1 * Hp:1 * Hp + H].set(params["biz"] + params["bhz"])
    bg = bg.at[:, 2 * Hp:2 * Hp + H].set(params["bin"])
    bg = bg.at[:, 3 * Hp:3 * Hp + H].set(params["bhn"])

    wc = jnp.zeros((2 * Hp, Hp), f32)
    wc = wc.at[:H, :H].set(params["wc_rnn"])
    wc = wc.at[Hp:Hp + H, :H].set(params["wc_ctx"])
    bc = jnp.zeros((1, Hp), f32).at[:, :H].set(params["bc"])

    wo = jnp.zeros((Hp, Vp), f32).at[:H, :V].set(params["wo"])
    # padded vocab columns get a huge negative bias so softmax assigns them zero mass
    bo = jnp.full((1, Vp), -1e30, f32).at[:, :V].set(params["bo"])

    emb = jnp.zeros((params["embedding"].shape[0], Hp), f32).at[:, :H].set(params["embedding"])

    return {
        "embedding": emb,
        "w_gru": wg.astype(bf16), "b_gru": bg,
        "w_concat": wc.astype(bf16), "b_concat": bc,
        "wo": wo.astype(bf16), "bo": bo,
    }


@functools.partial(jax.jit, static_argnames=("output_size", "tile_v"))
def attn_decoder_forward(packed, input_seq, last_hidden, encoder_outputs, *,
                         output_size, tile_v=128):
    """input_seq: (1,B) int32; last_hidden: (1,B,H); encoder_outputs: (L,B,H)."""
    B = input_seq.shape[1]
    H = last_hidden.shape[2]
    L = encoder_outputs.shape[0]
    Hp = packed["w_gru"].shape[0] // 2
    Vp = packed["wo"].shape[1]
    Bp = _round_up(B, 8)
    nv = Vp // tile_v

    # Embedding lookup + (8,128)-padding of the step state; dropout is the identity in eval.
    # TODO(synk): for the autoregressive decode loop, add a grid axis over decode steps, keep
    # the weights VMEM-resident via constant index_maps, and gather the embedding in-kernel
    # with PrefetchScalarGridSpec + a pl.Element BlockSpec on the table.
    emb = packed["embedding"][input_seq[0]]                               # (B, Hp) f32
    x_p = jnp.zeros((Bp, Hp), jnp.float32).at[:B].set(emb)
    h_p = jnp.zeros((Bp, Hp), jnp.float32).at[:B, :H].set(last_hidden[0])
    enc_p = jnp.zeros((Bp, L, Hp), jnp.float32).at[:B, :, :H].set(
        jnp.transpose(encoder_outputs, (1, 0, 2)))
    enc_p = enc_p.astype(jnp.bfloat16)                                    # (Bp, L, Hp)

    const2 = lambda j: (0, 0)
    const3 = lambda j: (0, 0, 0)
    out_p, hid_p = pl.pallas_call(
        attn_decoder_kernel,
        grid=(nv,),
        in_specs=[
            pl.BlockSpec((Bp, Hp), const2),                # x (embedded token)
            pl.BlockSpec((Bp, Hp), const2),                # h (previous hidden)
            pl.BlockSpec((Bp, L, Hp), const3),             # encoder outputs (batch-major)
            pl.BlockSpec((2 * Hp, 4 * Hp), const2),        # fused GRU weights
            pl.BlockSpec((1, 4 * Hp), const2),             # fused GRU bias
            pl.BlockSpec((2 * Hp, Hp), const2),            # fused concat weights
            pl.BlockSpec((1, Hp), const2),                 # concat bias
            pl.BlockSpec((Hp, tile_v), lambda j: (0, j)),  # wo vocab tile (streamed)
            pl.BlockSpec((1, tile_v), lambda j: (0, j)),   # bo vocab tile
        ],
        out_specs=(
            pl.BlockSpec((Bp, Vp), const2),                # softmax probabilities
            pl.BlockSpec((Bp, Hp), const2),                # new hidden state
        ),
        out_shape=(jax.ShapeDtypeStruct((Bp, Vp), jnp.float32),
                   jax.ShapeDtypeStruct((Bp, Hp), jnp.float32)),
        scratch_shapes=[pltpu.VMEM((Bp, Hp), jnp.float32),
                        pltpu.VMEM((nv, Bp, tile_v), jnp.float32)],
        input_output_aliases={1: 1},   # reuse the padded hidden buffer for the new hidden
        compiler_params=pltpu.CompilerParams(
            dimension_semantics=("arbitrary",)),           # vocab tiles carry state via scratch
        # TODO(synk): at production vocab sizes use tile_v = 512-2048 and set
        # vmem_limit_bytes with headroom for the double-buffered wo tiles.
    )(x_p, h_p, enc_p, packed["w_gru"], packed["b_gru"],
      packed["w_concat"], packed["b_concat"], packed["wo"], packed["bo"])

    return out_p[:B, :output_size], hid_p[None, :B, :H]


def ref_forward(params, input_seq, last_hidden, encoder_outputs):
    """Pure-JAX reference mirroring the PyTorch module (eval mode) with the same
    bf16-operand / f32-accumulation matmul precision as the kernel."""
    bf = jnp.bfloat16

    def mm(a, w):
        return jnp.dot(a.astype(bf), w.astype(bf), preferred_element_type=jnp.float32)

    emb = params["embedding"][input_seq[0]]
    h = last_hidden[0]
    i_r = mm(emb, params["wir"]) + params["bir"]
    i_z = mm(emb, params["wiz"]) + params["biz"]
    i_n = mm(emb, params["win"]) + params["bin"]
    h_r = mm(h, params["whr"]) + params["bhr"]
    h_z = mm(h, params["whz"]) + params["bhz"]
    h_n = mm(h, params["whn"]) + params["bhn"]
    r = jax.nn.sigmoid(i_r + h_r)
    z = jax.nn.sigmoid(i_z + h_z)
    n = jnp.tanh(i_n + r * h_n)
    h_new = (1.0 - z) * n + z * h

    enc = encoder_outputs.astype(bf)                                     # (L, B, H)
    e = jnp.einsum("bh,lbh->bl", h_new.astype(bf), enc,
                   preferred_element_type=jnp.float32)                   # (B, L)
    w = jax.nn.softmax(e, axis=1)
    context = jnp.einsum("bl,lbh->bh", w.astype(bf), enc,
                         preferred_element_type=jnp.float32)             # (B, H)
    c = jnp.tanh(mm(h_new, params["wc_rnn"]) + mm(context, params["wc_ctx"]) + params["bc"])
    out = jax.nn.softmax(mm(c, params["wo"]) + params["bo"], axis=1)
    return out, h_new[None]


if __name__ == "__main__":
    H, V, B, L = 32, 200, 4, 8    # hidden, vocab/output_size, batch, encoder seq len
    TILE_V = 128                  # padded vocab 256 -> 2 vocab tiles (exercises the V grid)
    key = jax.random.PRNGKey(0)
    kp, ki, kh, ke = jax.random.split(key, 4)

    params = init_params(kp, H, V)
    packed = pack_params(params, H, V, tile_v=TILE_V)

    input_seq = jax.random.randint(ki, (1, B), 0, V, dtype=jnp.int32)       # (1, B)
    last_hidden = 0.1 * jax.random.normal(kh, (1, B, H), jnp.float32)       # (n_layers, B, H)
    encoder_outputs = 0.1 * jax.random.normal(ke, (L, B, H), jnp.float32)   # (L, B, H)

    out, hidden = attn_decoder_forward(packed, input_seq, last_hidden, encoder_outputs,
                                       output_size=V, tile_v=TILE_V)
    out = jax.block_until_ready(out)
    hidden = jax.block_until_ready(hidden)

    out_ref, hidden_ref = ref_forward(params, input_seq, last_hidden, encoder_outputs)

    assert out.shape == (B, V) and hidden.shape == (1, B, H)
    assert jnp.allclose(hidden, hidden_ref, atol=5e-5, rtol=5e-5)
    # output tolerance is looser: the kernel uses the EUP approximate reciprocal
    # (pl.reciprocal(approx=True)) for both softmax normalizations
    assert jnp.allclose(out, out_ref, atol=2e-3, rtol=2e-2)
    assert jnp.allclose(jnp.sum(out, axis=1), 1.0, atol=1e-2)

    print("KERNEL_OK")
</pallas_src>

<mosaic_0001>
module attributes {stable_mosaic.version = 11 : i64} {
  func.func @attn_decoder_kernel(%arg0: i32, %arg1: memref<8x128xf32, #tpu.memory_space<vmem>>, %arg2: memref<8x128xf32, #tpu.memory_space<vmem>>, %arg3: memref<8x8x128xbf16, #tpu.memory_space<vmem>>, %arg4: memref<256x512xbf16, #tpu.memory_space<vmem>>, %arg5: memref<1x512xf32, #tpu.memory_space<vmem>>, %arg6: memref<256x128xbf16, #tpu.memory_space<vmem>>, %arg7: memref<1x128xf32, #tpu.memory_space<vmem>>, %arg8: memref<128x128xbf16, #tpu.memory_space<vmem>>, %arg9: memref<1x128xf32, #tpu.memory_space<vmem>>, %arg10: memref<8x256xf32, #tpu.memory_space<vmem>>, %arg11: memref<8x128xf32, #tpu.memory_space<vmem>>, %arg12: memref<8x128xf32, #tpu.memory_space<vmem>>, %arg13: memref<2x8x128xf32, #tpu.memory_space<vmem>>) attributes {dimension_semantics = [#tpu.dimension_semantics<arbitrary>], iteration_bounds = array<i64: 2>, scalar_prefetch = 0 : i64, scratch_operands = 2 : i64, tpu.core_type = #tpu.core_type<tc>, window_params = [{pipeline_mode = #tpu.pipeline_mode<synchronous>, transform_indices = @transform_0, window_bounds = array<i64: 8, 128>}, {pipeline_mode = #tpu.pipeline_mode<synchronous>, transform_indices = @transform_1, window_bounds = array<i64: 8, 128>}, {pipeline_mode = #tpu.pipeline_mode<synchronous>, transform_indices = @transform_2, window_bounds = array<i64: 8, 8, 128>}, {pipeline_mode = #tpu.pipeline_mode<synchronous>, transform_indices = @transform_3, window_bounds = array<i64: 256, 512>}, {pipeline_mode = #tpu.pipeline_mode<synchronous>, transform_indices = @transform_4, window_bounds = array<i64: 1, 512>}, {pipeline_mode = #tpu.pipeline_mode<synchronous>, transform_indices = @transform_5, window_bounds = array<i64: 256, 128>}, {pipeline_mode = #tpu.pipeline_mode<synchronous>, transform_indices = @transform_6, window_bounds = array<i64: 1, 128>}, {transform_indices = @transform_7, window_bounds = array<i64: 128, 128>}, {transform_indices = @transform_8, window_bounds = array<i64: 1, 128>}, {pipeline_mode = #tpu.pipeline_mode<synchronous>, transform_indices = @transform_9, window_bounds = array<i64: 8, 256>}, {pipeline_mode = #tpu.pipeline_mode<synchronous>, transform_indices = @transform_10, window_bounds = array<i64: 8, 128>}]} {
    %c0_i32 = arith.constant 0 : i32
    %0 = arith.cmpi eq, %arg0, %c0_i32 : i32
    %1 = arith.extui %0 : i1 to i32
    %c0_i32_0 = arith.constant 0 : i32
    %2 = arith.cmpi ne, %1, %c0_i32_0 : i32
    scf.if %2 {
      %c0_9 = arith.constant 0 : index
      %c0_10 = arith.constant 0 : index
      %17 = vector.load %arg1[%c0_9, %c0_10] : memref<8x128xf32, #tpu.memory_space<vmem>>, vector<8x128xf32>
      %c0_11 = arith.constant 0 : index
      %c0_12 = arith.constant 0 : index
      %18 = vector.load %arg2[%c0_11, %c0_12] : memref<8x128xf32, #tpu.memory_space<vmem>>, vector<8x128xf32>
      %19 = tpu.concatenate %17, %18 in 1 : vector<8x128xf32>, vector<8x128xf32> -> vector<8x256xf32>
      %20 = arith.truncf %19 : vector<8x256xf32> to vector<8x256xbf16>
      %c0_13 = arith.constant 0 : index
      %c0_14 = arith.constant 0 : index
      %21 = vector.load %arg4[%c0_13, %c0_14] : memref<256x512xbf16, #tpu.memory_space<vmem>>, vector<256x512xbf16>
      %cst_15 = arith.constant dense<0.000000e+00> : vector<8x512xf32>
      %22 = tpu.matmul %20, %21, %cst_15 {dimension_numbers = #tpu.dot_dimension_numbers<[1], [0], [0], [1], [0, 0, 1, 1], [], []>} : vector<8x256xbf16>, vector<256x512xbf16>, vector<8x512xf32> -> vector<8x512xf32>
      %c0_16 = arith.constant 0 : index
      %c0_17 = arith.constant 0 : index
      %23 = vector.load %arg5[%c0_16, %c0_17] : memref<1x512xf32, #tpu.memory_space<vmem>>, vector<1x512xf32>
      %24 = vector.broadcast %23 : vector<1x512xf32> to vector<8x512xf32>
      %25 = arith.addf %22, %24 : vector<8x512xf32>
      %26 = vector.extract_strided_slice %25 {offsets = [0, 0], sizes = [8, 128], strides = [1, 1]} : vector<8x512xf32> to vector<8x128xf32>
      %27 = arith.negf %26 : vector<8x128xf32>
      %28 = math.exp %27 : vector<8x128xf32>
      %cst_18 = arith.constant 1.000000e+00 : f32
      %29 = vector.broadcast %cst_18 : f32 to vector<8x128xf32>
      %30 = arith.addf %29, %28 : vector<8x128xf32>
      %31 = arith.divf %29, %30 : vector<8x128xf32>
      %32 = vector.extract_strided_slice %25 {offsets = [0, 128], sizes = [8, 128], strides = [1, 1]} : vector<8x512xf32> to vector<8x128xf32>
      %33 = arith.negf %32 : vector<8x128xf32>
      %34 = math.exp %33 : vector<8x128xf32>
      %cst_19 = arith.constant 1.000000e+00 : f32
      %35 = vector.broadcast %cst_19 : f32 to vector<8x128xf32>
      %36 = arith.addf %35, %34 : vector<8x128xf32>
      %37 = arith.divf %35, %36 : vector<8x128xf32>
      %38 = vector.extract_strided_slice %25 {offsets = [0, 256], sizes = [8, 128], strides = [1, 1]} : vector<8x512xf32> to vector<8x128xf32>
      %39 = vector.extract_strided_slice %25 {offsets = [0, 384], sizes = [8, 128], strides = [1, 1]} : vector<8x512xf32> to vector<8x128xf32>
      %40 = arith.mulf %31, %39 : vector<8x128xf32>
      %41 = arith.addf %38, %40 : vector<8x128xf32>
      %42 = math.tanh %41 : vector<8x128xf32>
      %cst_20 = arith.constant 1.000000e+00 : f32
      %43 = vector.broadcast %cst_20 : f32 to vector<8x128xf32>
      %44 = arith.subf %43, %37 : vector<8x128xf32>
      %45 = arith.mulf %44, %42 : vector<8x128xf32>
      %46 = arith.mulf %37, %18 : vector<8x128xf32>
      %47 = arith.addf %45, %46 : vector<8x128xf32>
      %c0_21 = arith.constant 0 : index
      %c0_22 = arith.constant 0 : index
      %48 = vector.load %arg11[%c0_21, %c0_22] : memref<8x128xf32, #tpu.memory_space<vmem>>, vector<8x128xf32>
      tpu.vector_store %arg11[%c0_21, %c0_22], %47 {strides = array<i32>} : memref<8x128xf32, #tpu.memory_space<vmem>>, vector<8x128xf32>,
      %c0_23 = arith.constant 0 : index
      %c0_24 = arith.constant 0 : index
      %c0_25 = arith.constant 0 : index
      %49 = vector.load %arg3[%c0_23, %c0_24, %c0_25] : memref<8x8x128xbf16, #tpu.memory_space<vmem>>, vector<8x8x128xbf16>
      %50 = arith.truncf %47 : vector<8x128xf32> to vector<8x128xbf16>
      %51 = vector.shape_cast %50 : vector<8x128xbf16> to vector<8x1x128xbf16>
      "tpu.trace_start"() <{level = 10 : i32, message = "bqh,blh->bql"}> : () -> ()
      %cst_26 = arith.constant dense<0.000000e+00> : vector<8x1x8xf32>
      %52 = tpu.matmul %51, %49, %cst_26 {dimension_numbers = #tpu.dot_dimension_numbers<[2], [2], [1], [1], [0, 0, 0, 1, 1, 1], [0], [0]>} : vector<8x1x128xbf16>, vector<8x8x128xbf16>, vector<8x1x8xf32> -> vector<8x1x8xf32>
      "tpu.trace_stop"() : () -> ()
      %53 = vector.shape_cast %52 : vector<8x1x8xf32> to vector<8x8xf32>
      %cst_27 = arith.constant dense<0xFF800000> : vector<8xf32>
      %54 = vector.multi_reduction <maximumf>, %53, %cst_27 [1] : vector<8x8xf32> to vector<8xf32>
      %55 = vector.shape_cast %54 : vector<8xf32> to vector<8x1xf32>
      %56 = vector.broadcast %55 : vector<8x1xf32> to vector<8x8xf32>
      %57 = arith.subf %53, %56 : vector<8x8xf32>
      %58 = math.exp %57 : vector<8x8xf32>
      %cst_28 = arith.constant dense<0.000000e+00> : vector<8xf32>
      %59 = vector.multi_reduction <add>, %58, %cst_28 [1] : vector<8x8xf32> to vector<8xf32>
      %60 = vector.shape_cast %59 : vector<8xf32> to vector<8x1xf32>
      %61 = tpu.reciprocal %60 {approx = true} : vector<8x1xf32> -> vector<8x1xf32>
      %62 = vector.broadcast %61 : vector<8x1xf32> to vector<8x8xf32>
      %63 = arith.mulf %58, %62 : vector<8x8xf32>
      %64 = arith.truncf %63 : vector<8x8xf32> to vector<8x8xbf16>
      %65 = vector.shape_cast %64 : vector<8x8xbf16> to vector<8x1x8xbf16>
      "tpu.trace_start"() <{level = 10 : i32, message = "bql,blh->bqh"}> : () -> ()
      %cst_29 = arith.constant dense<0.000000e+00> : vector<8x1x128xf32>
      %66 = tpu.matmul %65, %49, %cst_29 {dimension_numbers = #tpu.dot_dimension_numbers<[2], [1], [1], [2], [0, 0, 0, 1, 1, 2], [0], [0]>} : vector<8x1x8xbf16>, vector<8x8x128xbf16>, vector<8x1x128xf32> -> vector<8x1x128xf32>
      "tpu.trace_stop"() : () -> ()
      %67 = vector.shape_cast %66 : vector<8x1x128xf32> to vector<8x128xf32>
      %68 = tpu.concatenate %47, %67 in 1 : vector<8x128xf32>, vector<8x128xf32> -> vector<8x256xf32>
      %69 = arith.truncf %68 : vector<8x256xf32> to vector<8x256xbf16>
      %c0_30 = arith.constant 0 : index
      %c0_31 = arith.constant 0 : index
      %70 = vector.load %arg6[%c0_30, %c0_31] : memref<256x128xbf16, #tpu.memory_space<vmem>>, vector<256x128xbf16>
      %cst_32 = arith.constant dense<0.000000e+00> : vector<8x128xf32>
      %71 = tpu.matmul %69, %70, %cst_32 {dimension_numbers = #tpu.dot_dimension_numbers<[1], [0], [0], [1], [0, 0, 1, 1], [], []>} : vector<8x256xbf16>, vector<256x128xbf16>, vector<8x128xf32> -> vector<8x128xf32>
      %c0_33 = arith.constant 0 : index
      %c0_34 = arith.constant 0 : index
      %72 = vector.load %arg7[%c0_33, %c0_34] : memref<1x128xf32, #tpu.memory_space<vmem>>, vector<1x128xf32>
      %73 = vector.broadcast %72 : vector<1x128xf32> to vector<8x128xf32>
      %74 = arith.addf %71, %73 : vector<8x128xf32>
      %75 = math.tanh %74 : vector<8x128xf32>
      %c0_35 = arith.constant 0 : index
      %c0_36 = arith.constant 0 : index
      %76 = vector.load %arg12[%c0_35, %c0_36] : memref<8x128xf32, #tpu.memory_space<vmem>>, vector<8x128xf32>
      tpu.vector_store %arg12[%c0_35, %c0_36], %75 {strides = array<i32>} : memref<8x128xf32, #tpu.memory_space<vmem>>, vector<8x128xf32>,
    } else {
    }
    %c0 = arith.constant 0 : index
    %c0_1 = arith.constant 0 : index
    %3 = vector.load %arg12[%c0, %c0_1] : memref<8x128xf32, #tpu.memory_space<vmem>>, vector<8x128xf32>
    %4 = arith.truncf %3 : vector<8x128xf32> to vector<8x128xbf16>
    %c0_2 = arith.constant 0 : index
    %c0_3 = arith.constant 0 : index
    %5 = vector.load %arg8[%c0_2, %c0_3] : memref<128x128xbf16, #tpu.memory_space<vmem>>, vector<128x128xbf16>
    %cst = arith.constant dense<0.000000e+00> : vector<8x128xf32>
    %6 = tpu.matmul %4, %5, %cst {dimension_numbers = #tpu.dot_dimension_numbers<[1], [0], [0], [1], [0, 0, 1, 1], [], []>} : vector<8x128xbf16>, vector<128x128xbf16>, vector<8x128xf32> -> vector<8x128xf32>
    %c0_4 = arith.constant 0 : index
    %c0_5 = arith.constant 0 : index
    %7 = vector.load %arg9[%c0_4, %c0_5] : memref<1x128xf32, #tpu.memory_space<vmem>>, vector<1x128xf32>
    %8 = vector.broadcast %7 : vector<1x128xf32> to vector<8x128xf32>
    %9 = arith.addf %6, %8 : vector<8x128xf32>
    %10 = arith.index_cast %arg0 : i32 to index
    %c0_6 = arith.constant 0 : index
    %c0_7 = arith.constant 0 : index
    %11 = vector.load %arg13[%10, %c0_6, %c0_7] : memref<2x8x128xf32, #tpu.memory_space<vmem>>, vector<1x8x128xf32>
    %12 = vector.shape_cast %11 : vector<1x8x128xf32> to vector<8x128xf32>
    %13 = vector.shape_cast %9 : vector<8x128xf32> to vector<1x8x128xf32>
    tpu.vector_store %arg13[%10, %c0_6, %c0_7], %13 {strides = array<i32>} : memref<2x8x128xf32, #tpu.memory_space<vmem>>, vector<1x8x128xf32>,
    %c1_i32 = arith.constant 1 : i32
    %14 = arith.cmpi eq, %arg0, %c1_i32 : i32
    %15 = arith.extui %14 : i1 to i32
    %c0_i32_8 = arith.constant 0 : i32
    %16 = arith.cmpi ne, %15, %c0_i32_8 : i32
    scf.if %16 {
      %c0_9 = arith.constant 0 : index
      %c0_10 = arith.constant 0 : index
      %c0_11 = arith.constant 0 : index
      %17 = vector.load %arg13[%c0_9, %c0_10, %c0_11] : memref<2x8x128xf32, #tpu.memory_space<vmem>>, vector<2x8x128xf32>
      %cst_12 = arith.constant dense<0xFF800000> : vector<2x8xf32>
      %18 = vector.multi_reduction <maximumf>, %17, %cst_12 [2] : vector<2x8x128xf32> to vector<2x8xf32>
      %19 = vector.shape_cast %18 : vector<2x8xf32> to vector<2x8x1xf32>
      %cst_13 = arith.constant dense<0xFF800000> : vector<8x1xf32>
      %20 = vector.multi_reduction <maximumf>, %19, %cst_13 [0] : vector<2x8x1xf32> to vector<8x1xf32>
      %21 = vector.shape_cast %20 : vector<8x1xf32> to vector<1x8x1xf32>
      %22 = vector.broadcast %21 : vector<1x8x1xf32> to vector<2x8x128xf32>
      %23 = arith.subf %17, %22 : vector<2x8x128xf32>
      %24 = math.exp %23 : vector<2x8x128xf32>
      %cst_14 = arith.constant dense<0.000000e+00> : vector<2x8xf32>
      %25 = vector.multi_reduction <add>, %24, %cst_14 [2] : vector<2x8x128xf32> to vector<2x8xf32>
      %26 = vector.shape_cast %25 : vector<2x8xf32> to vector<2x8x1xf32>
      %cst_15 = arith.constant dense<0.000000e+00> : vector<8x1xf32>
      %27 = vector.multi_reduction <add>, %26, %cst_15 [0] : vector<2x8x1xf32> to vector<8x1xf32>
      %28 = vector.shape_cast %27 : vector<8x1xf32> to vector<1x8x1xf32>
      %29 = tpu.reciprocal %28 {approx = true} : vector<1x8x1xf32> -> vector<1x8x1xf32>
      %30 = vector.broadcast %29 : vector<1x8x1xf32> to vector<2x8x128xf32>
      %31 = arith.mulf %24, %30 : vector<2x8x128xf32>
      %32 = vector.extract_strided_slice %31 {offsets = [0, 0, 0], sizes = [1, 8, 128], strides = [1, 1, 1]} : vector<2x8x128xf32> to vector<1x8x128xf32>
      %33 = vector.shape_cast %32 : vector<1x8x128xf32> to vector<8x128xf32>
      %c0_16 = arith.constant 0 : index
      %c0_17 = arith.constant 0 : index
      %34 = vector.load %arg10[%c0_16, %c0_17] : memref<8x256xf32, #tpu.memory_space<vmem>>, vector<8x128xf32>
      tpu.vector_store %arg10[%c0_16, %c0_17], %33 {strides = array<i32>} : memref<8x256xf32, #tpu.memory_space<vmem>>, vector<8x128xf32>,
      %35 = vector.extract_strided_slice %31 {offsets = [1, 0, 0], sizes = [1, 8, 128], strides = [1, 1, 1]} : vector<2x8x128xf32> to vector<1x8x128xf32>
      %36 = vector.shape_cast %35 : vector<1x8x128xf32> to vector<8x128xf32>
      %c0_18 = arith.constant 0 : index
      %c128 = arith.constant 128 : index
      %37 = vector.load %arg10[%c0_18, %c128] : memref<8x256xf32, #tpu.memory_space<vmem>>, vector<8x128xf32>
      tpu.vector_store %arg10[%c0_18, %c128], %36 {strides = array<i32>} : memref<8x256xf32, #tpu.memory_space<vmem>>, vector<8x128xf32>,
    } else {
    }
    return
  }
  func.func @transform_0(%arg0: i32) -> (i32, i32) {
    %c0_i32 = arith.constant 0 : i32
    %c0_i32_0 = arith.constant 0 : i32
    %c0_i32_1 = arith.constant 0 : i32
    return %c0_i32, %c0_i32_0 : i32, i32
  }
  func.func @transform_1(%arg0: i32) -> (i32, i32) {
    %c0_i32 = arith.constant 0 : i32
    %c0_i32_0 = arith.constant 0 : i32
    %c0_i32_1 = arith.constant 0 : i32
    return %c0_i32, %c0_i32_0 : i32, i32
  }
  func.func @transform_2(%arg0: i32) -> (i32, i32, i32) {
    %c0_i32 = arith.constant 0 : i32
    %c0_i32_0 = arith.constant 0 : i32
    %c0_i32_1 = arith.constant 0 : i32
    %c0_i32_2 = arith.constant 0 : i32
    return %c0_i32, %c0_i32_0, %c0_i32_1 : i32, i32, i32
  }
  func.func @transform_3(%arg0: i32) -> (i32, i32) {
    %c0_i32 = arith.constant 0 : i32
    %c0_i32_0 = arith.constant 0 : i32
    %c0_i32_1 = arith.constant 0 : i32
    return %c0_i32, %c0_i32_0 : i32, i32
  }
  func.func @transform_4(%arg0: i32) -> (i32, i32) {
    %c0_i32 = arith.constant 0 : i32
    %c0_i32_0 = arith.constant 0 : i32
    %c0_i32_1 = arith.constant 0 : i32
    return %c0_i32, %c0_i32_0 : i32, i32
  }
  func.func @transform_5(%arg0: i32) -> (i32, i32) {
    %c0_i32 = arith.constant 0 : i32
    %c0_i32_0 = arith.constant 0 : i32
    %c0_i32_1 = arith.constant 0 : i32
    return %c0_i32, %c0_i32_0 : i32, i32
  }
  func.func @transform_6(%arg0: i32) -> (i32, i32) {
    %c0_i32 = arith.constant 0 : i32
    %c0_i32_0 = arith.constant 0 : i32
    %c0_i32_1 = arith.constant 0 : i32
    return %c0_i32, %c0_i32_0 : i32, i32
  }
  func.func @transform_7(%arg0: i32) -> (i32, i32) {
    %c0_i32 = arith.constant 0 : i32
    %c0_i32_0 = arith.constant 0 : i32
    return %c0_i32, %arg0 : i32, i32
  }
  func.func @transform_8(%arg0: i32) -> (i32, i32) {
    %c0_i32 = arith.constant 0 : i32
    %c0_i32_0 = arith.constant 0 : i32
    return %c0_i32, %arg0 : i32, i32
  }
  func.func @transform_9(%arg0: i32) -> (i32, i32) {
    %c0_i32 = arith.constant 0 : i32
    %c0_i32_0 = arith.constant 0 : i32
    %c0_i32_1 = arith.constant 0 : i32
    return %c0_i32, %c0_i32_0 : i32, i32
  }
  func.func @transform_10(%arg0: i32) -> (i32, i32) {
    %c0_i32 = arith.constant 0 : i32
    %c0_i32_0 = arith.constant 0 : i32
    %c0_i32_1 = arith.constant 0 : i32
    return %c0_i32, %c0_i32_0 : i32, i32
  }
}

</mosaic_0001>

<llo_original>
// kernel: attn_decoder_forward.1
$region0: #{attn_decoder_forward.1}
  #allocation0 [shape = 'u32[]', space=smem, size = 0x4, offset = 0x4, fixed_abs, tag = 'smem constant byte address 0x4 - core index']
  #allocation1 [shape = 'u32[144,128]{1,0:T(1,128)}', space=vmem, size = 0x12000, scoped, tag = 'internal scratch']
  #allocation2 [shape = 'f32[8,128]{1,0:T(8,128)}', space=vmem, size = 0x1000, scoped, tag = 'scratch operand']
  #allocation3 [shape = 'f32[2,8,128]{2,1,0:T(8,128)}', space=vmem, size = 0x2000, scoped, tag = 'scratch operand']
  %s0 = inlined_call_operand.vmem [shape: f32[8,128], index: 0, kind: input, shape index: {}]
  %s1 = inlined_call_operand.vmem [shape: f32[8,128], index: 1, kind: input, shape index: {}, may-alias: {1,10}]
  %s2 = inlined_call_operand.vmem [shape: bf16[8,8,128], index: 2, kind: input, shape index: {}]
  %s3 = inlined_call_operand.hbm [shape: bf16[256,512], index: 3, kind: input, shape index: {}]
  %s4 = inlined_call_operand.vmem [shape: f32[1,512], index: 4, kind: input, shape index: {}]
  %s5 = inlined_call_operand.vmem [shape: bf16[256,128], index: 5, kind: input, shape index: {}]
  %s6 = inlined_call_operand.vmem [shape: f32[1,128], index: 6, kind: input, shape index: {}]
  %s7 = inlined_call_operand.hbm [shape: bf16[128,256], index: 7, kind: input, shape index: {}]
  %s8 = inlined_call_operand.vmem [shape: f32[1,256], index: 8, kind: input, shape index: {}]
  %s9 = inlined_call_operand.vmem [shape: f32[8,256], index: 9, kind: output, shape index: {0}]
  %s10 = inlined_call_operand.vmem [shape: f32[8,128], index: 10, kind: output, shape index: {1}, may-alias: {1,10}]
  %11 = xla_tuple %s9, %s10
  %s12 = sld [smem:[#allocation0]]
  $region93: #{attn_decoder_forward.1} parent=0
    _
  %s14 = ssub.s32 1, %s12
  %s15 = scalar_select 0, %s14, %s12
  $region1: #{attn_decoder_forward.1} parent=0
    #allocation4 [shape = 'u8[262144]{0}', space=vmem, size = 0x40000, scoped, tag = 'input window, operand 3, single buffered']
    #allocation5 [shape = 's32[2]{0}', space=sflag, size = 0x8, scoped, tag = 'scoped memory for attn_decoder_forward.1']
    #allocation6 [shape = 'u8[65536]{0}', space=vmem, size = 0x10000, scoped, tag = 'input window, operand 7']
    #allocation7 [shape = 's32[2]{0}', space=sflag, size = 0x8, scoped, tag = 'scoped memory for attn_decoder_forward.1']
    %16 = vsyncpa [#allocation5], 0
    %17 = vsyncpa [#allocation7], 0
    %s18 = scalar_lea.sflag [#allocation7], 1
    %19 = vsyncpa %s18, 0
    loop: start=0, step=1, limit=4
    $region2: #{attn_decoder_forward.1} parent=1 // loop_pre_header
      _
    $region3: #{attn_decoder_forward.1} parent=1 // loop_header
      %s21 = sphi 0, %s25
      %p22 = scmp.ge.s32.totalorder %s21, 4
      %s29 = sphi 0, %s29
      %s31 = sphi 0, %s29
      %s32 = sphi 0, %s31
      %s46 = sphi 0, %s32
      %s50 = sphi 0, %s50
      %s52 = sphi 0, %s50
      %s53 = sphi 0, %s52
      %s67 = sphi 0, %s53
      %s71 = sphi 0, %s71
      %s73 = sphi 0, %s71
      %s74 = sphi 0, %s73
      %s88 = sphi 0, %s74
      %s92 = sphi 0, %s92
      %s94 = sphi 0, %s92
      %s95 = sphi 0, %s94
      %s109 = sphi 0, %s95
      %s113 = sphi 0, %s113
      %s115 = sphi 0, %s113
      %s116 = sphi 0, %s115
      %s130 = sphi 0, %s116
      %s134 = sphi 0, %s134
      %s136 = sphi 0, %s134
      %s137 = sphi 0, %s136
      %s151 = sphi 0, %s137
      %s155 = sphi 0, %s155
      %s157 = sphi 0, %s155
      %s158 = sphi 0, %s157
      %s172 = sphi 0, %s158
      %s178 = sphi 0, %s180
      %s181 = sphi 0, %s178
      %s182 = sphi 0, %s181
      %s198 = sphi 0, %s182
      %s204 = sphi 0, %s206
      %s207 = sphi 0, %s204
      %s208 = sphi 0, %s207
      %s224 = sphi 0, %s208
      %s228 = sphi 0, %s228
      %s230 = sphi 0, %s228
      %s231 = sphi 0, %s230
      %s245 = sphi 0, %s231
      %s249 = sphi 0, %s249
      %s251 = sphi 0, %s249
      %s252 = sphi 0, %s251
      %s266 = sphi 0, %s252
    $region4: #{attn_decoder_forward.1} parent=1 // loop_header_branch
      %24 = sbr.rel (%p22) target = $region8
    $region5: #{attn_decoder_forward.1} parent=1 // loop_body
      %s26 = ssub.s32 %s21, 1
      %s27 = ssub.s32 %s21, 2
      %s28 = sadd.s32 %s21, 1
      %s30 = sadd.s32 %s29, 1
      %p33 = scmp.eq.s32.totalorder %s21, 1
      %p34 = scmp.ne.s32.totalorder %s29, %s31
      %p35 = scmp.eq.s32.totalorder %s21, 0
      %p36 = por %p34, %p35
      %p37 = scmp.ne.s32.totalorder %s29, %s31
      %p38 = scmp.eq.s32.totalorder %s26, 1
      %p39 = por %p37, %p38
      %p40 = scmp.ne.s32.totalorder %s31, %s32
      %p41 = scmp.eq.s32.totalorder %s26, 0
      %p42 = por %p40, %p41
      %p43 = scmp.ne.s32.totalorder %s31, %s32
      %p44 = scmp.eq.s32.totalorder %s27, 1
      %p45 = por %p43, %p44
      %p47 = scmp.ne.s32.totalorder %s32, %s46
      %p48 = scmp.eq.s32.totalorder %s27, 0
      %p49 = por %p47, %p48
      %s51 = sadd.s32 %s50, 1
      %p54 = scmp.eq.s32.totalorder %s21, 1
      %p55 = scmp.ne.s32.totalorder %s50, %s52
      %p56 = scmp.eq.s32.totalorder %s21, 0
      %p57 = por %p55, %p56
      %p58 = scmp.ne.s32.totalorder %s50, %s52
      %p59 = scmp.eq.s32.totalorder %s26, 1
      %p60 = por %p58, %p59
      %p61 = scmp.ne.s32.totalorder %s52, %s53
      %p62 = scmp.eq.s32.totalorder %s26, 0
      %p63 = por %p61, %p62
      %p64 = scmp.ne.s32.totalorder %s52, %s53
      %p65 = scmp.eq.s32.totalorder %s27, 1
      %p66 = por %p64, %p65
      %p68 = scmp.ne.s32.totalorder %s53, %s67
      %p69 = scmp.eq.s32.totalorder %s27, 0
      %p70 = por %p68, %p69
      %s72 = sadd.s32 %s71, 1
      %p75 = scmp.eq.s32.totalorder %s21, 1
      %p76 = scmp.ne.s32.totalorder %s71, %s73
      %p77 = scmp.eq.s32.totalorder %s21, 0
      %p78 = por %p76, %p77
      %p79 = scmp.ne.s32.totalorder %s71, %s73
      %p80 = scmp.eq.s32.totalorder %s26, 1
      %p81 = por %p79, %p80
      %p82 = scmp.ne.s32.totalorder %s73, %s74
      %p83 = scmp.eq.s32.totalorder %s26, 0
      %p84 = por %p82, %p83
      %p85 = scmp.ne.s32.totalorder %s73, %s74
      %p86 = scmp.eq.s32.totalorder %s27, 1
      %p87 = por %p85, %p86
      %p89 = scmp.ne.s32.totalorder %s74, %s88
      %p90 = scmp.eq.s32.totalorder %s27, 0
      %p91 = por %p89, %p90
      %s93 = sadd.s32 %s92, 1
      %p96 = scmp.eq.s32.totalorder %s21, 1
      %p97 = scmp.ne.s32.totalorder %s92, %s94
      %p98 = scmp.eq.s32.totalorder %s21, 0
      %p99 = por %p97, %p98
      %p100 = scmp.ne.s32.totalorder %s92, %s94
      %p101 = scmp.eq.s32.totalorder %s26, 1
      %p102 = por %p100, %p101
      %p103 = scmp.ne.s32.totalorder %s94, %s95
      %p104 = scmp.eq.s32.totalorder %s26, 0
      %p105 = por %p103, %p104
      %p106 = scmp.ne.s32.totalorder %s94, %s95
      %p107 = scmp.eq.s32.totalorder %s27, 1
      %p108 = por %p106, %p107
      %p110 = scmp.ne.s32.totalorder %s95, %s109
      %p111 = scmp.eq.s32.totalorder %s27, 0
      %p112 = por %p110, %p111
      %s114 = sadd.s32 %s113, 1
      %p117 = scmp.eq.s32.totalorder %s21, 1
      %p118 = scmp.ne.s32.totalorder %s113, %s115
      %p119 = scmp.eq.s32.totalorder %s21, 0
      %p120 = por %p118, %p119
      %p121 = scmp.ne.s32.totalorder %s113, %s115
      %p122 = scmp.eq.s32.totalorder %s26, 1
      %p123 = por %p121, %p122
      %p124 = scmp.ne.s32.totalorder %s115, %s116
      %p125 = scmp.eq.s32.totalorder %s26, 0
      %p126 = por %p124, %p125
      %p127 = scmp.ne.s32.totalorder %s115, %s116
      %p128 = scmp.eq.s32.totalorder %s27, 1
      %p129 = por %p127, %p128
      %p131 = scmp.ne.s32.totalorder %s116, %s130
      %p132 = scmp.eq.s32.totalorder %s27, 0
      %p133 = por %p131, %p132
      %s135 = sadd.s32 %s134, 1
      %p138 = scmp.eq.s32.totalorder %s21, 1
      %p139 = scmp.ne.s32.totalorder %s134, %s136
      %p140 = scmp.eq.s32.totalorder %s21, 0
      %p141 = por %p139, %p140
      %p142 = scmp.ne.s32.totalorder %s134, %s136
      %p143 = scmp.eq.s32.totalorder %s26, 1
      %p144 = por %p142, %p143
      %p145 = scmp.ne.s32.totalorder %s136, %s137
      %p146 = scmp.eq.s32.totalorder %s26, 0
      %p147 = por %p145, %p146
      %p148 = scmp.ne.s32.totalorder %s136, %s137
      %p149 = scmp.eq.s32.totalorder %s27, 1
      %p150 = por %p148, %p149
      %p152 = scmp.ne.s32.totalorder %s137, %s151
      %p153 = scmp.eq.s32.totalorder %s27, 0
      %p154 = por %p152, %p153
      %s156 = sadd.s32 %s155, 1
      %p159 = scmp.eq.s32.totalorder %s21, 1
      %p160 = scmp.ne.s32.totalorder %s155, %s157
      %p161 = scmp.eq.s32.totalorder %s21, 0
      %p162 = por %p160, %p161
      %p163 = scmp.ne.s32.totalorder %s155, %s157
      %p164 = scmp.eq.s32.totalorder %s26, 1
      %p165 = por %p163, %p164
      %p166 = scmp.ne.s32.totalorder %s157, %s158
      %p167 = scmp.eq.s32.totalorder %s26, 0
      %p168 = por %p166, %p167
      %p169 = scmp.ne.s32.totalorder %s157, %s158
      %p170 = scmp.eq.s32.totalorder %s27, 1
      %p171 = por %p169, %p170
      %p173 = scmp.ne.s32.totalorder %s158, %s172
      %p174 = scmp.eq.s32.totalorder %s27, 0
      %p175 = por %p173, %p174
      %s176 = ssub.s32 %s21, %s28
      %p177 = scmp.eq.s32.totalorder %s176, 0
      %s179 = sadd.s32 %s178, 1
      %s180 = scalar_select %p177, %s178, %s179
      %p183 = pneg %p177
      %p184 = scmp.eq.s32.totalorder %s21, 1
      %p185 = por %p183, %p184
      %p186 = scmp.ne.s32.totalorder %s178, %s181
      %p187 = scmp.eq.s32.totalorder %s21, 0
      %p188 = por %p186, %p187
      %p189 = scmp.ne.s32.totalorder %s178, %s181
      %p190 = scmp.eq.s32.totalorder %s26, 1
      %p191 = por %p189, %p190
      %p192 = scmp.ne.s32.totalorder %s181, %s182
      %p193 = scmp.eq.s32.totalorder %s26, 0
      %p194 = por %p192, %p193
      %p195 = scmp.ne.s32.totalorder %s181, %s182
      %p196 = scmp.eq.s32.totalorder %s27, 1
      %p197 = por %p195, %p196
      %p199 = scmp.ne.s32.totalorder %s182, %s198
      %p200 = scmp.eq.s32.totalorder %s27, 0
      %p201 = por %p199, %p200
      %s202 = ssub.s32 %s21, %s28
      %p203 = scmp.eq.s32.totalorder %s202, 0
      %s205 = sadd.s32 %s204, 1
      %s206 = scalar_select %p203, %s204, %s205
      %p209 = pneg %p203
      %p210 = scmp.eq.s32.totalorder %s21, 1
      %p211 = por %p209, %p210
      %p212 = scmp.ne.s32.totalorder %s204, %s207
      %p213 = scmp.eq.s32.totalorder %s21, 0
      %p214 = por %p212, %p213
      %p215 = scmp.ne.s32.totalorder %s204, %s207
      %p216 = scmp.eq.s32.totalorder %s26, 1
      %p217 = por %p215, %p216
      %p218 = scmp.ne.s32.totalorder %s207, %s208
      %p219 = scmp.eq.s32.totalorder %s26, 0
      %p220 = por %p218, %p219
      %p221 = scmp.ne.s32.totalorder %s207, %s208
      %p222 = scmp.eq.s32.totalorder %s27, 1
      %p223 = por %p221, %p222
      %p225 = scmp.ne.s32.totalorder %s208, %s224
      %p226 = scmp.eq.s32.totalorder %s27, 0
      %p227 = por %p225, %p226
      %s229 = sadd.s32 %s228, 1
      %p232 = scmp.eq.s32.totalorder %s21, 1
      %p233 = scmp.ne.s32.totalorder %s228, %s230
      %p234 = scmp.eq.s32.totalorder %s21, 0
      %p235 = por %p233, %p234
      %p236 = scmp.ne.s32.totalorder %s228, %s230
      %p237 = scmp.eq.s32.totalorder %s26, 1
      %p238 = por %p236, %p237
      %p239 = scmp.ne.s32.totalorder %s230, %s231
      %p240 = scmp.eq.s32.totalorder %s26, 0
      %p241 = por %p239, %p240
      %p242 = scmp.ne.s32.totalorder %s230, %s231
      %p243 = scmp.eq.s32.totalorder %s27, 1
      %p244 = por %p242, %p243
      %p246 = scmp.ne.s32.totalorder %s231, %s245
      %p247 = scmp.eq.s32.totalorder %s27, 0
      %p248 = por %p246, %p247
      %s250 = sadd.s32 %s249, 1
      %p253 = scmp.eq.s32.totalorder %s21, 1
      %p254 = scmp.ne.s32.totalorder %s249, %s251
      %p255 = scmp.eq.s32.totalorder %s21, 0
      %p256 = por %p254, %p255
      %p257 = scmp.ne.s32.totalorder %s249, %s251
      %p258 = scmp.eq.s32.totalorder %s26, 1
      %p259 = por %p257, %p258
      %p260 = scmp.ne.s32.totalorder %s251, %s252
      %p261 = scmp.eq.s32.totalorder %s26, 0
      %p262 = por %p260, %p261
      %p263 = scmp.ne.s32.totalorder %s251, %s252
      %p264 = scmp.eq.s32.totalorder %s27, 1
      %p265 = por %p263, %p264
      %p267 = scmp.ne.s32.totalorder %s252, %s266
      %p268 = scmp.eq.s32.totalorder %s27, 0
      %p269 = por %p267, %p268
      %p270 = scmp.le.s32.totalorder 1, %s21
      %p271 = scmp.lt.s32.totalorder %s21, 3
      %p272 = pnand %p270, %p271
      %p273 = pneg %p272
      // Predicated region
      $region9: #{attn_decoder_forward.1} parent=5 // pred_check
        _
      $region10: #{attn_decoder_forward.1} parent=5 // pred_check_branch
        %275 = sbr.rel (%p272) target = $region12
      $region11: #{attn_decoder_forward.1} parent=5 // pred_region
        %s276 = ssub.s32 %s21, 1
        // Predicated region
        $region13: #{attn_decoder_forward.1} parent=11 // pred_check
          %p277 = pneg %p42
        $region14: #{attn_decoder_forward.1} parent=11 // pred_check_branch
          %279 = sbr.rel (%p277) target = $region16
        $region15: #{attn_decoder_forward.1} parent=11 // pred_region
          _
        $region16: #{attn_decoder_forward.1} parent=11 // pred_fallthru
          _
        // Predicated region
        $region17: #{attn_decoder_forward.1} parent=11 // pred_check
          %p280 = pneg %p63
        $region18: #{attn_decoder_forward.1} parent=11 // pred_check_branch
          %282 = sbr.rel (%p280) target = $region20
        $region19: #{attn_decoder_forward.1} parent=11 // pred_region
          _
        $region20: #{attn_decoder_forward.1} parent=11 // pred_fallthru
          _
        // Predicated region
        $region21: #{attn_decoder_forward.1} parent=11 // pred_check
          %p283 = pneg %p84
        $region22: #{attn_decoder_forward.1} parent=11 // pred_check_branch
          %285 = sbr.rel (%p283) target = $region24
        $region23: #{attn_decoder_forward.1} parent=11 // pred_region
          _
        $region24: #{attn_decoder_forward.1} parent=11 // pred_fallthru
          _
        // Predicated region
        $region25: #{attn_decoder_forward.1} parent=11 // pred_check
          %p286 = pneg %p105
        $region26: #{attn_decoder_forward.1} parent=11 // pred_check_branch
          %288 = sbr.rel (%p286) target = $region28
        $region27: #{attn_decoder_forward.1} parent=11 // pred_region
          %s290 = ssub.s32 8192, 8192
          %291 = vsyncadd [#allocation5], %s290
          %s292 = sshll.u32 [#allocation4], 4
          %s293 = int_to_ptr.vmem [resolvable:$true] %s292
          %298 = dma.hbm_to_vmem [thread:$0]  %s3, 8192, %s293, [#allocation5], 256, 256, 16
        $region28: #{attn_decoder_forward.1} parent=11 // pred_fallthru
          _
        // Predicated region
        $region29: #{attn_decoder_forward.1} parent=11 // pred_check
          %p299 = pneg %p126
        $region30: #{attn_decoder_forward.1} parent=11 // pred_check_branch
          %301 = sbr.rel (%p299) target = $region32
        $region31: #{attn_decoder_forward.1} parent=11 // pred_region
          _
        $region32: #{attn_decoder_forward.1} parent=11 // pred_fallthru
          _
        // Predicated region
        $region33: #{attn_decoder_forward.1} parent=11 // pred_check
          %p302 = pneg %p147
        $region34: #{attn_decoder_forward.1} parent=11 // pred_check_branch
          %304 = sbr.rel (%p302) target = $region36
        $region35: #{attn_decoder_forward.1} parent=11 // pred_region
          _
        $region36: #{attn_decoder_forward.1} parent=11 // pred_fallthru
          _
        // Predicated region
        $region37: #{attn_decoder_forward.1} parent=11 // pred_check
          %p305 = pneg %p168
        $region38: #{attn_decoder_forward.1} parent=11 // pred_check_branch
          %307 = sbr.rel (%p305) target = $region40
        $region39: #{attn_decoder_forward.1} parent=11 // pred_region
          _
        $region40: #{attn_decoder_forward.1} parent=11 // pred_fallthru
          _
      $region12: #{attn_decoder_forward.1} parent=5 // pred_fallthru
        _
      %p308 = scmp.lt.s32.totalorder %s21, 2
      // Predicated region
      $region41: #{attn_decoder_forward.1} parent=5 // pred_check
        %p309 = pneg %p308
      $region42: #{attn_decoder_forward.1} parent=5 // pred_check_branch
        %311 = sbr.rel (%p309) target = $region44
      $region43: #{attn_decoder_forward.1} parent=5 // pred_region
        // Predicated region
        $region45: #{attn_decoder_forward.1} parent=43 // pred_check
          %p312 = pneg %p188
        $region46: #{attn_decoder_forward.1} parent=43 // pred_check_branch
          %314 = sbr.rel (%p312) target = $region48
        $region47: #{attn_decoder_forward.1} parent=43 // pred_region
          %s315 = sand.u32 %s178, 1
          %s316 = scalar_lea.sflag [#allocation7], %s315
          %s317 = sand.u32 %s178, 1
          %s318 = smul.addr %s317, 64
          %s319 = scalar_lea.vmem [#allocation6], %s318
          %s321 = ssub.s32 1024, 1024
          %322 = vsyncadd %s316, %s321
          %s323 = smul.addr %s21, 64
          %s324 = scalar_lea.hbm %s7, %s323
          %s325 = sshll.u32 %s319, 4
          %s326 = int_to_ptr.vmem [resolvable:$true] %s325
          %331 = dma.hbm_to_vmem [thread:$0]  %s324, 1024, %s326, %s316, 128, 64, 4
        $region48: #{attn_decoder_forward.1} parent=43 // pred_fallthru
          _
        // Predicated region
        $region49: #{attn_decoder_forward.1} parent=43 // pred_check
          %p332 = pneg %p214
        $region50: #{attn_decoder_forward.1} parent=43 // pred_check_branch
          %334 = sbr.rel (%p332) target = $region52
        $region51: #{attn_decoder_forward.1} parent=43 // pred_region
          %p335 = scmp.lt.s32.totalorder %s21, 1
          %s336 = scalar_select %p335, %s21, 1
          %s337 = scalar_lea.vmem %s8, %s336
        $region52: #{attn_decoder_forward.1} parent=43 // pred_fallthru
          _
      $region44: #{attn_decoder_forward.1} parent=5 // pred_fallthru
        _
      %p338 = scmp.le.s32.totalorder 1, %s21
      %p339 = scmp.lt.s32.totalorder %s21, 3
      %p340 = pnand %p338, %p339
      %p341 = pneg %p340
      // Predicated region
      $region53: #{attn_decoder_forward.1} parent=5 // pred_check
        _
      $region54: #{attn_decoder_forward.1} parent=5 // pred_check_branch
        %343 = sbr.rel (%p340) target = $region56
      $region55: #{attn_decoder_forward.1} parent=5 // pred_region
        %s344 = ssub.s32 %s21, 1
        // Predicated region
        $region57: #{attn_decoder_forward.1} parent=55 // pred_check
          %p345 = pneg %p105
        $region58: #{attn_decoder_forward.1} parent=55 // pred_check_branch
          %347 = sbr.rel (%p345) target = $region60
        $region59: #{attn_decoder_forward.1} parent=55 // pred_region
          %348 = dma.done [#allocation5], 8192
        $region60: #{attn_decoder_forward.1} parent=55 // pred_fallthru
          _
        %s349 = sand.u32 %s181, 1
        %s350 = scalar_lea.sflag [#allocation7], %s349
        %s351 = sand.u32 %s181, 1
        %s352 = smul.addr %s351, 64
        %s353 = scalar_lea.vmem [#allocation6], %s352
        // Predicated region
        $region61: #{attn_decoder_forward.1} parent=55 // pred_check
          %p354 = pneg %p194
        $region62: #{attn_decoder_forward.1} parent=55 // pred_check_branch
          %356 = sbr.rel (%p354) target = $region64
        $region63: #{attn_decoder_forward.1} parent=55 // pred_region
          %357 = dma.done %s350, 1024
        $region64: #{attn_decoder_forward.1} parent=55 // pred_fallthru
          _
        %p358 = pneg %p42
        %p359 = pneg %p39
        %p360 = pneg %p63
        %p361 = pneg %p60
        %p362 = pneg %p84
        %p363 = pneg %p81
        %p364 = pneg %p105
        %p365 = pneg %p102
        %p366 = pneg %p126
        %p367 = pneg %p123
        %p368 = pneg %p147
        %p369 = pneg %p144
        %p370 = pneg %p168
        %p371 = pneg %p165
        %s372 = sand.u32 %s181, 1
        %s373 = scalar_lea.sflag [#allocation7], %s372
        %s374 = sand.u32 %s181, 1
        %s375 = smul.addr %s374, 64
        %s376 = scalar_lea.vmem [#allocation6], %s375
        %p377 = pneg %p194
        %p378 = pneg %p191
        %p379 = scmp.lt.s32.totalorder %s26, 1
        %s380 = scalar_select %p379, %s26, 1
        %s381 = scalar_lea.vmem %s8, %s380
        %p382 = pneg %p220
        %p383 = pneg %p217
        %p384 = pneg %p241
        %p385 = pneg %p238
        %p386 = pneg %p262
        %p387 = pneg %p259
        %p388 = scmp.lt.s32.totalorder %s26, 1
        %s389 = scalar_select %p388, %s26, 1
        %s390 = scalar_lea.vmem %s8, %s389
        %p392 = scmp.eq.s32.totalorder %s26, 0
        // Predicated region
        $region65: #{attn_decoder_forward.1} parent=55 // pred_check
          %p393 = pneg %p392
        $region66: #{attn_decoder_forward.1} parent=55 // pred_check_branch
          %395 = sbr.rel (%p393) target = $region68
        $region67: #{attn_decoder_forward.1} parent=55 // pred_region
          %v396 = vld [vmem:[%s0] sm:$0xff]
          %v397 = vld [vmem:[%s1] sm:$0xff]
          %v398 = vpack.c.bf16 %v396, %v396
          %v399 = vpack.c.bf16 %v397, %v397
          %v400 = vld [vmem:[#allocation4] sm:$0xff]
          %v401 = vld [vmem:[#allocation4 + $0x8] sm:$0xff]
          %v402 = vld [vmem:[#allocation4 + $0x10] sm:$0xff]
          %v403 = vld [vmem:[#allocation4 + $0x18] sm:$0xff]
          %v404 = vld [vmem:[#allocation4 + $0x20] sm:$0xff]
          %v405 = vld [vmem:[#allocation4 + $0x28] sm:$0xff]
          %v406 = vld [vmem:[#allocation4 + $0x30] sm:$0xff]
          %v407 = vld [vmem:[#allocation4 + $0x38] sm:$0xff]
          %v408 = vld [vmem:[#allocation4 + $0x40] sm:$0xff]
          %v409 = vld [vmem:[#allocation4 + $0x48] sm:$0xff]
          %v410 = vld [vmem:[#allocation4 + $0x50] sm:$0xff]
          %v411 = vld [vmem:[#allocation4 + $0x58] sm:$0xff]
          %v412 = vld [vmem:[#allocation4 + $0x60] sm:$0xff]
          %v413 = vld [vmem:[#allocation4 + $0x68] sm:$0xff]
          %v414 = vld [vmem:[#allocation4 + $0x70] sm:$0xff]
          %v415 = vld [vmem:[#allocation4 + $0x78] sm:$0xff]
          %v416 = vld [vmem:[#allocation4 + $0x80] sm:$0xff]
          %v417 = vld [vmem:[#allocation4 + $0x88] sm:$0xff]
          %v418 = vld [vmem:[#allocation4 + $0x90] sm:$0xff]
          %v419 = vld [vmem:[#allocation4 + $0x98] sm:$0xff]
          %v420 = vld [vmem:[#allocation4 + $0xa0] sm:$0xff]
          %v421 = vld [vmem:[#allocation4 + $0xa8] sm:$0xff]
          %v422 = vld [vmem:[#allocation4 + $0xb0] sm:$0xff]
          %v423 = vld [vmem:[#allocation4 + $0xb8] sm:$0xff]
          %v424 = vld [vmem:[#allocation4 + $0xc0] sm:$0xff]
          %v425 = vld [vmem:[#allocation4 + $0xc8] sm:$0xff]
          %v426 = vld [vmem:[#allocation4 + $0xd0] sm:$0xff]
          %v427 = vld [vmem:[#allocation4 + $0xd8] sm:$0xff]
          %v428 = vld [vmem:[#allocation4 + $0xe0] sm:$0xff]
          %v429 = vld [vmem:[#allocation4 + $0xe8] sm:$0xff]
          %v430 = vld [vmem:[#allocation4 + $0xf0] sm:$0xff]
          %v431 = vld [vmem:[#allocation4 + $0xf8] sm:$0xff]
          %v432 = vld [vmem:[#allocation4 + $0x100] sm:$0xff]
          %v433 = vld [vmem:[#allocation4 + $0x108] sm:$0xff]
          %v434 = vld [vmem:[#allocation4 + $0x110] sm:$0xff]
          %v435 = vld [vmem:[#allocation4 + $0x118] sm:$0xff]
          %v436 = vld [vmem:[#allocation4 + $0x120] sm:$0xff]
          %v437 = vld [vmem:[#allocation4 + $0x128] sm:$0xff]
          %v438 = vld [vmem:[#allocation4 + $0x130] sm:$0xff]
          %v439 = vld [vmem:[#allocation4 + $0x138] sm:$0xff]
          %v440 = vld [vmem:[#allocation4 + $0x140] sm:$0xff]
          %v441 = vld [vmem:[#allocation4 + $0x148] sm:$0xff]
          %v442 = vld [vmem:[#allocation4 + $0x150] sm:$0xff]
          %v443 = vld [vmem:[#allocation4 + $0x158] sm:$0xff]
          %v444 = vld [vmem:[#allocation4 + $0x160] sm:$0xff]
          %v445 = vld [vmem:[#allocation4 + $0x168] sm:$0xff]
          %v446 = vld [vmem:[#allocation4 + $0x170] sm:$0xff]
          %v447 = vld [vmem:[#allocation4 + $0x178] sm:$0xff]
          %v448 = vld [vmem:[#allocation4 + $0x180] sm:$0xff]
          %v449 = vld [vmem:[#allocation4 + $0x188] sm:$0xff]
          %v450 = vld [vmem:[#allocation4 + $0x190] sm:$0xff]
          %v451 = vld [vmem:[#allocation4 + $0x198] sm:$0xff]
          %v452 = vld [vmem:[#allocation4 + $0x1a0] sm:$0xff]
          %v453 = vld [vmem:[#allocation4 + $0x1a8] sm:$0xff]
          %v454 = vld [vmem:[#allocation4 + $0x1b0] sm:$0xff]
          %v455 = vld [vmem:[#allocation4 + $0x1b8] sm:$0xff]
          %v456 = vld [vmem:[#allocation4 + $0x1c0] sm:$0xff]
          %v457 = vld [vmem:[#allocation4 + $0x1c8] sm:$0xff]
          %v458 = vld [vmem:[#allocation4 + $0x1d0] sm:$0xff]
          %v459 = vld [vmem:[#allocation4 + $0x1d8] sm:$0xff]
          %v460 = vld [vmem:[#allocation4 + $0x1e0] sm:$0xff]
          %v461 = vld [vmem:[#allocation4 + $0x1e8] sm:$0xff]
          %v462 = vld [vmem:[#allocation4 + $0x1f0] sm:$0xff]
          %v463 = vld [vmem:[#allocation4 + $0x1f8] sm:$0xff]
          %v464 = vld [vmem:[%s4] sm:$0xf]
          %v466 = vlaneseq
          %v467 = vshrl.u32 %v466, 7
          %v468 = vsub.s32 0, %v467
          %v469 = vrot.slane %v464, %v468
          %v470 = vlaneseq
          %v471 = vshrl.u32 %v470, 7
          %v472 = vsub.s32 1, %v471
          %v473 = vrot.slane %v464, %v472
          %v474 = vlaneseq
          %v475 = vshrl.u32 %v474, 7
          %v476 = vsub.s32 2, %v475
          %v477 = vrot.slane %v464, %v476
          %v478 = vlaneseq
          %v479 = vshrl.u32 %v478, 7
          %v480 = vsub.s32 3, %v479
          %v481 = vrot.slane %v464, %v480
          %v550 = vunpack.c.l.b16 %v400
          %v551 = vunpack.c.h.b16 %v400
          %v552 = vunpack.c.l.b16 %v401
          %v553 = vunpack.c.h.b16 %v401
          %v554 = vunpack.c.l.b16 %v402
          %v555 = vunpack.c.h.b16 %v402
          %v556 = vunpack.c.l.b16 %v403
          %v557 = vunpack.c.h.b16 %v403
          %v558 = vunpack.c.l.b16 %v404
          %v559 = vunpack.c.h.b16 %v404
          %v560 = vunpack.c.l.b16 %v405
          %v561 = vunpack.c.h.b16 %v405
          %v562 = vunpack.c.l.b16 %v406
          %v563 = vunpack.c.h.b16 %v406
          %v564 = vunpack.c.l.b16 %v407
          %v565 = vunpack.c.h.b16 %v407
          %v566 = vunpack.c.l.b16 %v408
          %v567 = vunpack.c.h.b16 %v408
          %v568 = vunpack.c.l.b16 %v409
          %v569 = vunpack.c.h.b16 %v409
          %v570 = vunpack.c.l.b16 %v410
          %v571 = vunpack.c.h.b16 %v410
          %v572 = vunpack.c.l.b16 %v411
          %v573 = vunpack.c.h.b16 %v411
          %v574 = vunpack.c.l.b16 %v412
          %v575 = vunpack.c.h.b16 %v412
          %v576 = vunpack.c.l.b16 %v413
          %v577 = vunpack.c.h.b16 %v413
          %v578 = vunpack.c.l.b16 %v414
          %v579 = vunpack.c.h.b16 %v414
          %v580 = vunpack.c.l.b16 %v415
          %v581 = vunpack.c.h.b16 %v415
          %v582 = vunpack.c.l.b16 %v416
          %v583 = vunpack.c.h.b16 %v416
          %v584 = vunpack.c.l.b16 %v417
          %v585 = vunpack.c.h.b16 %v417
          %v586 = vunpack.c.l.b16 %v418
          %v587 = vunpack.c.h.b16 %v418
          %v588 = vunpack.c.l.b16 %v419
          %v589 = vunpack.c.h.b16 %v419
          %v590 = vunpack.c.l.b16 %v420
          %v591 = vunpack.c.h.b16 %v420
          %v592 = vunpack.c.l.b16 %v421
          %v593 = vunpack.c.h.b16 %v421
          %v594 = vunpack.c.l.b16 %v422
          %v595 = vunpack.c.h.b16 %v422
          %v596 = vunpack.c.l.b16 %v423
          %v597 = vunpack.c.h.b16 %v423
          %v598 = vunpack.c.l.b16 %v424
          %v599 = vunpack.c.h.b16 %v424
          %v600 = vunpack.c.l.b16 %v425
          %v601 = vunpack.c.h.b16 %v425
          %v602 = vunpack.c.l.b16 %v426
          %v603 = vunpack.c.h.b16 %v426
          %v604 = vunpack.c.l.b16 %v427
          %v605 = vunpack.c.h.b16 %v427
          %v606 = vunpack.c.l.b16 %v428
          %v607 = vunpack.c.h.b16 %v428
          %v608 = vunpack.c.l.b16 %v429
          %v609 = vunpack.c.h.b16 %v429
          %v610 = vunpack.c.l.b16 %v430
          %v611 = vunpack.c.h.b16 %v430
          %v612 = vunpack.c.l.b16 %v431
          %v613 = vunpack.c.h.b16 %v431
          %v614 = vunpack.c.l.b16 %v432
          %v615 = vunpack.c.h.b16 %v432
          %v616 = vunpack.c.l.b16 %v433
          %v617 = vunpack.c.h.b16 %v433
          %v618 = vunpack.c.l.b16 %v434
          %v619 = vunpack.c.h.b16 %v434
          %v620 = vunpack.c.l.b16 %v435
          %v621 = vunpack.c.h.b16 %v435
          %v622 = vunpack.c.l.b16 %v436
          %v623 = vunpack.c.h.b16 %v436
          %v624 = vunpack.c.l.b16 %v437
          %v625 = vunpack.c.h.b16 %v437
          %v626 = vunpack.c.l.b16 %v438
          %v627 = vunpack.c.h.b16 %v438
          %v628 = vunpack.c.l.b16 %v439
          %v629 = vunpack.c.h.b16 %v439
          %v630 = vunpack.c.l.b16 %v440
          %v631 = vunpack.c.h.b16 %v440
          %v632 = vunpack.c.l.b16 %v441
          %v633 = vunpack.c.h.b16 %v441
          %v634 = vunpack.c.l.b16 %v442
          %v635 = vunpack.c.h.b16 %v442
          %v636 = vunpack.c.l.b16 %v443
          %v637 = vunpack.c.h.b16 %v443
          %v638 = vunpack.c.l.b16 %v444
          %v639 = vunpack.c.h.b16 %v444
          %v640 = vunpack.c.l.b16 %v445
          %v641 = vunpack.c.h.b16 %v445
          %v642 = vunpack.c.l.b16 %v446
          %v643 = vunpack.c.h.b16 %v446
          %v644 = vunpack.c.l.b16 %v447
          %v645 = vunpack.c.h.b16 %v447
          %v646 = vunpack.c.l.b16 %v448
          %v647 = vunpack.c.h.b16 %v448
          %v648 = vunpack.c.l.b16 %v449
          %v649 = vunpack.c.h.b16 %v449
          %v650 = vunpack.c.l.b16 %v450
          %v651 = vunpack.c.h.b16 %v450
          %v652 = vunpack.c.l.b16 %v451
          %v653 = vunpack.c.h.b16 %v451
          %v654 = vunpack.c.l.b16 %v452
          %v655 = vunpack.c.h.b16 %v452
          %v656 = vunpack.c.l.b16 %v453
          %v657 = vunpack.c.h.b16 %v453
          %v658 = vunpack.c.l.b16 %v454
          %v659 = vunpack.c.h.b16 %v454
          %v660 = vunpack.c.l.b16 %v455
          %v661 = vunpack.c.h.b16 %v455
          %v662 = vunpack.c.l.b16 %v456
          %v663 = vunpack.c.h.b16 %v456
          %v664 = vunpack.c.l.b16 %v457
          %v665 = vunpack.c.h.b16 %v457
          %v666 = vunpack.c.l.b16 %v458
          %v667 = vunpack.c.h.b16 %v458
          %v668 = vunpack.c.l.b16 %v459
          %v669 = vunpack.c.h.b16 %v459
          %v670 = vunpack.c.l.b16 %v460
          %v671 = vunpack.c.h.b16 %v460
          %v672 = vunpack.c.l.b16 %v461
          %v673 = vunpack.c.h.b16 %v461
          %v674 = vunpack.c.l.b16 %v462
          %v675 = vunpack.c.h.b16 %v462
          %v676 = vunpack.c.l.b16 %v463
          %v677 = vunpack.c.h.b16 %v463
          %v678 = vpack.c.b16 %v554, %v550
          %v679 = vpack.c.b16 %v555, %v551
          %v680 = vpack.c.b16 %v556, %v552
          %v681 = vpack.c.b16 %v557, %v553
          %v682 = vpack.c.b16 %v562, %v558
          %v683 = vpack.c.b16 %v563, %v559
          %v684 = vpack.c.b16 %v564, %v560
          %v685 = vpack.c.b16 %v565, %v561
          %v686 = vpack.c.b16 %v570, %v566
          %v687 = vpack.c.b16 %v571, %v567
          %v688 = vpack.c.b16 %v572, %v568
          %v689 = vpack.c.b16 %v573, %v569
          %v690 = vpack.c.b16 %v578, %v574
          %v691 = vpack.c.b16 %v579, %v575
          %v692 = vpack.c.b16 %v580, %v576
          %v693 = vpack.c.b16 %v581, %v577
          %v694 = vpack.c.b16 %v586, %v582
          %v695 = vpack.c.b16 %v587, %v583
          %v696 = vpack.c.b16 %v588, %v584
          %v697 = vpack.c.b16 %v589, %v585
          %v698 = vpack.c.b16 %v594, %v590
          %v699 = vpack.c.b16 %v595, %v591
          %v700 = vpack.c.b16 %v596, %v592
          %v701 = vpack.c.b16 %v597, %v593
          %v702 = vpack.c.b16 %v602, %v598
          %v703 = vpack.c.b16 %v603, %v599
          %v704 = vpack.c.b16 %v604, %v600
          %v705 = vpack.c.b16 %v605, %v601
          %v706 = vpack.c.b16 %v610, %v606
          %v707 = vpack.c.b16 %v611, %v607
          %v708 = vpack.c.b16 %v612, %v608
          %v709 = vpack.c.b16 %v613, %v609
          %v710 = vpack.c.b16 %v618, %v614
          %v711 = vpack.c.b16 %v619, %v615
          %v712 = vpack.c.b16 %v620, %v616
          %v713 = vpack.c.b16 %v621, %v617
          %v714 = vpack.c.b16 %v626, %v622
          %v715 = vpack.c.b16 %v627, %v623
          %v716 = vpack.c.b16 %v628, %v624
          %v717 = vpack.c.b16 %v629, %v625
          %v718 = vpack.c.b16 %v634, %v630
          %v719 = vpack.c.b16 %v635, %v631
          %v720 = vpack.c.b16 %v636, %v632
          %v721 = vpack.c.b16 %v637, %v633
          %v722 = vpack.c.b16 %v642, %v638
          %v723 = vpack.c.b16 %v643, %v639
          %v724 = vpack.c.b16 %v644, %v640
          %v725 = vpack.c.b16 %v645, %v641
          %v726 = vpack.c.b16 %v650, %v646
          %v727 = vpack.c.b16 %v651, %v647
          %v728 = vpack.c.b16 %v652, %v648
          %v729 = vpack.c.b16 %v653, %v649
          %v730 = vpack.c.b16 %v658, %v654
          %v731 = vpack.c.b16 %v659, %v655
          %v732 = vpack.c.b16 %v660, %v656
          %v733 = vpack.c.b16 %v661, %v657
          %v734 = vpack.c.b16 %v666, %v662
          %v735 = vpack.c.b16 %v667, %v663
          %v736 = vpack.c.b16 %v668, %v664
          %v737 = vpack.c.b16 %v669, %v665
          %v738 = vpack.c.b16 %v674, %v670
          %v739 = vpack.c.b16 %v675, %v671
          %v740 = vpack.c.b16 %v676, %v672
          %v741 = vpack.c.b16 %v677, %v673
          %806 = vmatprep.subr.bf16.mxu0 %v707
          %807 = vmatpush1.bf16.msra.mxu0 %v706
          %808 = vmatprep.subr.bf16.mxu0 %v703
          %809 = vmatpush1.bf16.msra.mxu0 %v702
          %810 = vmatprep.subr.bf16.mxu0 %v699
          %811 = vmatpush1.bf16.msra.mxu0 %v698
          %812 = vmatprep.subr.bf16.mxu0 %v695
          %813 = vmatpush1.bf16.msra.mxu0 %v694
          %814 = vmatprep.subr.bf16.mxu0 %v691
          %815 = vmatpush1.bf16.msra.mxu0 %v690
          %816 = vmatprep.subr.bf16.mxu0 %v687
          %817 = vmatpush1.bf16.msra.mxu0 %v686
          %818 = vmatprep.subr.bf16.mxu0 %v683
          %819 = vmatpush1.bf16.msra.mxu0 %v682
          %820 = vmatprep.subr.bf16.mxu0 %v679
          %821 = vmatpush1.bf16.msra.mxu0 %v678
          %822 = vmatprep.subr.bf16.mxu0 %v739
          %823 = vmatpush2.bf16.msra.mxu0 %v738
          %824 = vmatprep.subr.bf16.mxu0 %v735
          %825 = vmatpush2.bf16.msra.mxu0 %v734
          %826 = vmatprep.subr.bf16.mxu0 %v731
          %827 = vmatpush2.bf16.msra.mxu0 %v730
          %828 = vmatprep.subr.bf16.mxu0 %v727
          %829 = vmatpush2.bf16.msra.mxu0 %v726
          %830 = vmatprep.subr.bf16.mxu0 %v723
          %831 = vmatpush2.bf16.msra.mxu0 %v722
          %832 = vmatprep.subr.bf16.mxu0 %v719
          %833 = vmatpush2.bf16.msra.mxu0 %v718
          %834 = vmatprep.subr.bf16.mxu0 %v715
          %835 = vmatpush2.bf16.msra.mxu0 %v714
          %836 = vmatprep.subr.bf16.mxu0 %v711
          %837 = vmatpush2.bf16.msra.mxu0 %v710
          %838 = vmatprep.mubr.bf16.mxu0 %v399
          %839 = vmatmul.mubr.bf16.gmra.mxu0 %v398
          %v840 = vpop.f32.mrf.mxu0
          %v841 = vadd.f32 %v469, %v840
          %v842 = vpop.f32.mrf.mxu0
          %v843 = vadd.f32 %v473, %v842
          %v844 = vpop.f32.mrf.mxu0
          %v845 = vpop.f32.mrf.mxu0
          %846 = vdwg.mxu0
          %847 = vmatprep.subr.bf16.mxu0 %v709
          %848 = vmatpush1.bf16.msra.mxu0 %v708
          %849 = vmatprep.subr.bf16.mxu0 %v705
          %850 = vmatpush1.bf16.msra.mxu0 %v704
          %851 = vmatprep.subr.bf16.mxu0 %v701
          %852 = vmatpush1.bf16.msra.mxu0 %v700
          %853 = vmatprep.subr.bf16.mxu0 %v697
          %854 = vmatpush1.bf16.msra.mxu0 %v696
          %855 = vmatprep.subr.bf16.mxu0 %v693
          %856 = vmatpush1.bf16.msra.mxu0 %v692
          %857 = vmatprep.subr.bf16.mxu0 %v689
          %858 = vmatpush1.bf16.msra.mxu0 %v688
          %859 = vmatprep.subr.bf16.mxu0 %v685
          %860 = vmatpush1.bf16.msra.mxu0 %v684
          %861 = vmatprep.subr.bf16.mxu0 %v681
          %862 = vmatpush1.bf16.msra.mxu0 %v680
          %863 = vmatprep.subr.bf16.mxu0 %v741
          %864 = vmatpush2.bf16.msra.mxu0 %v740
          %865 = vmatprep.subr.bf16.mxu0 %v737
          %866 = vmatpush2.bf16.msra.mxu0 %v736
          %867 = vmatprep.subr.bf16.mxu0 %v733
          %868 = vmatpush2.bf16.msra.mxu0 %v732
          %869 = vmatprep.subr.bf16.mxu0 %v729
          %870 = vmatpush2.bf16.msra.mxu0 %v728
          %871 = vmatprep.subr.bf16.mxu0 %v725
          %872 = vmatpush2.bf16.msra.mxu0 %v724
          %873 = vmatprep.subr.bf16.mxu0 %v721
          %874 = vmatpush2.bf16.msra.mxu0 %v720
          %875 = vmatprep.subr.bf16.mxu0 %v717
          %876 = vmatpush2.bf16.msra.mxu0 %v716
          %877 = vmatprep.subr.bf16.mxu0 %v713
          %878 = vmatpush2.bf16.msra.mxu0 %v712
          %879 = vmatprep.mubr.bf16.mxu0 %v399
          %880 = vmatmul.mubr.bf16.gmra.mxu0 %v398
          %v881 = vpop.f32.mrf.mxu0
          %v882 = vadd.f32 %v477, %v881
          %v883 = vpop.f32.mrf.mxu0
          %v884 = vadd.f32 %v481, %v883
          %v885 = vpop.f32.mrf.mxu0
          %v886 = vpop.f32.mrf.mxu0
          %887 = vdwg.mxu0
          %v888 = vxor.u32 %v841, 2147483648
          %v889 = vmul.f32 %v888, 1.442695
          %v890 = vpow.pop %v889
          %v891 = vadd.f32 %v890, 1.0
          %v892 = vrcp.pop %v891
          %v893 = vmul.f32 1.0, %v892
          %v894 = vxor.u32 %v843, 2147483648
          %v895 = vmul.f32 %v894, 1.442695
          %v896 = vpow.pop %v895
          %v897 = vadd.f32 %v896, 1.0
          %v898 = vrcp.pop %v897
          %v899 = vmul.f32 1.0, %v898
          %v900 = vmul.f32 %v893, %v884
          %v901 = vadd.f32 %v882, %v900
          %v902 = vtanh.pop %v901
          %v903 = vsub.f32 1.0, %v899
          %v904 = vmul.f32 %v903, %v902
          %v905 = vmul.f32 %v899, %v397
          %v906 = vadd.f32 %v904, %v905
          %907 = vst [vmem:[%s10] sm:$0xff] %v906
          %v908 = vld [vmem:[%s2] sm:$0xf]
          %v909 = vld [vmem:[%s2 + $0x4] sm:$0xf]
          %v910 = vld [vmem:[%s2 + $0x8] sm:$0xf]
          %v911 = vld [vmem:[%s2 + $0xc] sm:$0xf]
          %v912 = vld [vmem:[%s2 + $0x10] sm:$0xf]
          %v913 = vld [vmem:[%s2 + $0x14] sm:$0xf]
          %v914 = vld [vmem:[%s2 + $0x18] sm:$0xf]
          %v915 = vld [vmem:[%s2 + $0x1c] sm:$0xf]
          %v916 = vpack.c.bf16 %v906, %v906
          %v919 = vunpack.c.l.s4 1966171168
          %v920 = vunpack.c.0.s8 %v919
          %v921 = vlaneseq
          %v922 = vshrl.u32 %v921, 7
          %v923 = vsub.s32 %v920, %v922
          %v924 = vrot.slane %v916, %v923
          %v925 = vcombine.high %v924, %v924
          %v927 = vunpack.c.l.s4 1966171168
          %v928 = vunpack.c.0.s8 %v927
          %v929 = vlaneseq
          %v930 = vshrl.u32 %v929, 7
          %v931 = vsub.s32 %v928, %v930
          %v932 = vrot.slane %v924, %v931
          %v934 = vunpack.c.l.s4 1966171168
          %v935 = vunpack.c.0.s8 %v934
          %v936 = vlaneseq
          %v937 = vshrl.u32 %v936, 7
          %v938 = vsub.s32 %v935, %v937
          %v939 = vrot.slane %v925, %v938
          %v940 = vcombine.high %v932, %v932
          %v941 = vcombine.high %v939, %v939
          %v942 = vunpack.i.l.s16 %v932
          %v943 = vunpack.i.h.s16 %v932
          %v944 = vunpack.i.l.s16 %v939
          %v945 = vunpack.i.h.s16 %v939
          %v946 = vunpack.i.l.s16 %v940
          %v947 = vunpack.i.h.s16 %v940
          %v948 = vunpack.i.l.s16 %v941
          %v949 = vunpack.i.h.s16 %v941
          %v950 = vpack.i.b16 %v942, %v942
          %v951 = vlaneseq
          %v952 = vshrl.u32 %v951, 7
          %v953 = vsub.s32 0, %v952
          %v954 = vrot.slane %v950, %v953
          %956 = vmatprep.subr.bf16.mxu0 0
          %957 = vmatpush1.bf16.xpose.msra.mxu0 0
          %958 = vmatprep.subr.bf16.mxu0 0
          %959 = vmatpush1.bf16.xpose.msra.mxu0 0
          %960 = vmatprep.subr.bf16.mxu0 0
          %961 = vmatpush1.bf16.xpose.msra.mxu0 0
          %962 = vmatprep.subr.bf16.mxu0 0
          %963 = vmatpush1.bf16.xpose.msra.mxu0 0
          %964 = vmatprep.subr.bf16.mxu0 0
          %965 = vmatpush1.bf16.xpose.msra.mxu0 0
          %966 = vmatprep.subr.bf16.mxu0 0
          %967 = vmatpush1.bf16.xpose.msra.mxu0 0
          %968 = vmatprep.subr.bf16.mxu0 0
          %969 = vmatpush1.bf16.xpose.msra.mxu0 0
          %970 = vmatprep.subr.bf16.mxu0 0
          %971 = vmatpush1.bf16.xpose.msra.mxu0 %v908
          %972 = vmatprep.subr.bf16.mxu0 0
          %973 = vmatpush2.bf16.xpose.msra.mxu0 0
          %974 = vmatprep.subr.bf16.mxu0 0
          %975 = vmatpush2.bf16.xpose.msra.mxu0 0
          %976 = vmatprep.subr.bf16.mxu0 0
          %977 = vmatpush2.bf16.xpose.msra.mxu0 0
          %978 = vmatprep.subr.bf16.mxu0 0
          %979 = vmatpush2.bf16.xpose.msra.mxu0 0
          %980 = vmatprep.subr.bf16.mxu0 0
          %981 = vmatpush2.bf16.xpose.msra.mxu0 0
          %982 = vmatprep.subr.bf16.mxu0 0
          %983 = vmatpush2.bf16.xpose.msra.mxu0 0
          %984 = vmatprep.subr.bf16.mxu0 0
          %985 = vmatpush2.bf16.xpose.msra.mxu0 0
          %986 = vmatprep.subr.bf16.mxu0 0
          %987 = vmatpush2.bf16.xpose.msra.mxu0 0
          %988 = vmatprep.mubr.bf16.mxu0 0
          %989 = vmatmul.mubr.bf16.gmra.mxu0 %v954
          %v990 = vpop.f32.mrf.mxu0
          %v991 = vadd.f32 0.0, %v990
          %v992 = vpop.f32.mrf.mxu0
          %v993 = vpop.f32.mrf.mxu0
          %v994 = vpop.f32.mrf.mxu0
          %995 = vdwg.mxu0
          %v996 = vpack.i.b16 %v943, %v943
          %v997 = vlaneseq
          %v998 = vshrl.u32 %v997, 7
          %v999 = vsub.s32 0, %v998
          %v1000 = vrot.slane %v996, %v999
          %1002 = vmatprep.subr.bf16.mxu0 0
          %1003 = vmatpush1.bf16.xpose.msra.mxu0 0
          %1004 = vmatprep.subr.bf16.mxu0 0
          %1005 = vmatpush1.bf16.xpose.msra.mxu0 0
          %1006 = vmatprep.subr.bf16.mxu0 0
          %1007 = vmatpush1.bf16.xpose.msra.mxu0 0
          %1008 = vmatprep.subr.bf16.mxu0 0
          %1009 = vmatpush1.bf16.xpose.msra.mxu0 0
          %1010 = vmatprep.subr.bf16.mxu0 0
          %1011 = vmatpush1.bf16.xpose.msra.mxu0 0
          %1012 = vmatprep.subr.bf16.mxu0 0
          %1013 = vmatpush1.bf16.xpose.msra.mxu0 0
          %1014 = vmatprep.subr.bf16.mxu0 0
          %1015 = vmatpush1.bf16.xpose.msra.mxu0 0
          %1016 = vmatprep.subr.bf16.mxu0 0
          %1017 = vmatpush1.bf16.xpose.msra.mxu0 %v909
          %1018 = vmatprep.subr.bf16.mxu0 0
          %1019 = vmatpush2.bf16.xpose.msra.mxu0 0
          %1020 = vmatprep.subr.bf16.mxu0 0
          %1021 = vmatpush2.bf16.xpose.msra.mxu0 0
          %1022 = vmatprep.subr.bf16.mxu0 0
          %1023 = vmatpush2.bf16.xpose.msra.mxu0 0
          %1024 = vmatprep.subr.bf16.mxu0 0
          %1025 = vmatpush2.bf16.xpose.msra.mxu0 0
          %1026 = vmatprep.subr.bf16.mxu0 0
          %1027 = vmatpush2.bf16.xpose.msra.mxu0 0
          %1028 = vmatprep.subr.bf16.mxu0 0
          %1029 = vmatpush2.bf16.xpose.msra.mxu0 0
          %1030 = vmatprep.subr.bf16.mxu0 0
          %1031 = vmatpush2.bf16.xpose.msra.mxu0 0
          %1032 = vmatprep.subr.bf16.mxu0 0
          %1033 = vmatpush2.bf16.xpose.msra.mxu0 0
          %1034 = vmatprep.mubr.bf16.mxu0 0
          %1035 = vmatmul.mubr.bf16.gmra.mxu0 %v1000
          %v1036 = vpop.f32.mrf.mxu0
          %v1037 = vadd.f32 0.0, %v1036
          %v1038 = vpop.f32.mrf.mxu0
          %v1039 = vpop.f32.mrf.mxu0
          %v1040 = vpop.f32.mrf.mxu0
          %1041 = vdwg.mxu0
          %v1042 = vpack.i.b16 %v944, %v944
          %v1043 = vlaneseq
          %v1044 = vshrl.u32 %v1043, 7
          %v1045 = vsub.s32 0, %v1044
          %v1046 = vrot.slane %v1042, %v1045
          %1048 = vmatprep.subr.bf16.mxu0 0
          %1049 = vmatpush1.bf16.xpose.msra.mxu0 0
          %1050 = vmatprep.subr.bf16.mxu0 0
          %1051 = vmatpush1.bf16.xpose.msra.mxu0 0
          %1052 = vmatprep.subr.bf16.mxu0 0
          %1053 = vmatpush1.bf16.xpose.msra.mxu0 0
          %1054 = vmatprep.subr.bf16.mxu0 0
          %1055 = vmatpush1.bf16.xpose.msra.mxu0 0
          %1056 = vmatprep.subr.bf16.mxu0 0
          %1057 = vmatpush1.bf16.xpose.msra.mxu0 0
          %1058 = vmatprep.subr.bf16.mxu0 0
          %1059 = vmatpush1.bf16.xpose.msra.mxu0 0
          %1060 = vmatprep.subr.bf16.mxu0 0
          %1061 = vmatpush1.bf16.xpose.msra.mxu0 0
          %1062 = vmatprep.subr.bf16.mxu0 0
          %1063 = vmatpush1.bf16.xpose.msra.mxu0 %v910
          %1064 = vmatprep.subr.bf16.mxu0 0
          %1065 = vmatpush2.bf16.xpose.msra.mxu0 0
          %1066 = vmatprep.subr.bf16.mxu0 0
          %1067 = vmatpush2.bf16.xpose.msra.mxu0 0
          %1068 = vmatprep.subr.bf16.mxu0 0
          %1069 = vmatpush2.bf16.xpose.msra.mxu0 0
          %1070 = vmatprep.subr.bf16.mxu0 0
          %1071 = vmatpush2.bf16.xpose.msra.mxu0 0
          %1072 = vmatprep.subr.bf16.mxu0 0
          %1073 = vmatpush2.bf16.xpose.msra.mxu0 0
          %1074 = vmatprep.subr.bf16.mxu0 0
          %1075 = vmatpush2.bf16.xpose.msra.mxu0 0
          %1076 = vmatprep.subr.bf16.mxu0 0
          %1077 = vmatpush2.bf16.xpose.msra.mxu0 0
          %1078 = vmatprep.subr.bf16.mxu0 0
          %1079 = vmatpush2.bf16.xpose.msra.mxu0 0
          %1080 = vmatprep.mubr.bf16.mxu0 0
          %1081 = vmatmul.mubr.bf16.gmra.mxu0 %v1046
          %v1082 = vpop.f32.mrf.mxu0
          %v1083 = vadd.f32 0.0, %v1082
          %v1084 = vpop.f32.mrf.mxu0
          %v1085 = vpop.f32.mrf.mxu0
          %v1086 = vpop.f32.mrf.mxu0
          %1087 = vdwg.mxu0
          %v1088 = vpack.i.b16 %v945, %v945
          %v1089 = vlaneseq
          %v1090 = vshrl.u32 %v1089, 7
          %v1091 = vsub.s32 0, %v1090
          %v1092 = vrot.slane %v1088, %v1091
          %1094 = vmatprep.subr.bf16.mxu0 0
          %1095 = vmatpush1.bf16.xpose.msra.mxu0 0
          %1096 = vmatprep.subr.bf16.mxu0 0
          %1097 = vmatpush1.bf16.xpose.msra.mxu0 0
          %1098 = vmatprep.subr.bf16.mxu0 0
          %1099 = vmatpush1.bf16.xpose.msra.mxu0 0
          %1100 = vmatprep.subr.bf16.mxu0 0
          %1101 = vmatpush1.bf16.xpose.msra.mxu0 0
          %1102 = vmatprep.subr.bf16.mxu0 0
          %1103 = vmatpush1.bf16.xpose.msra.mxu0 0
          %1104 = vmatprep.subr.bf16.mxu0 0
          %1105 = vmatpush1.bf16.xpose.msra.mxu0 0
          %1106 = vmatprep.subr.bf16.mxu0 0
          %1107 = vmatpush1.bf16.xpose.msra.mxu0 0
          %1108 = vmatprep.subr.bf16.mxu0 0
          %1109 = vmatpush1.bf16.xpose.msra.mxu0 %v911
          %1110 = vmatprep.subr.bf16.mxu0 0
          %1111 = vmatpush2.bf16.xpose.msra.mxu0 0
          %1112 = vmatprep.subr.bf16.mxu0 0
          %1113 = vmatpush2.bf16.xpose.msra.mxu0 0
          %1114 = vmatprep.subr.bf16.mxu0 0
          %1115 = vmatpush2.bf16.xpose.msra.mxu0 0
          %1116 = vmatprep.subr.bf16.mxu0 0
          %1117 = vmatpush2.bf16.xpose.msra.mxu0 0
          %1118 = vmatprep.subr.bf16.mxu0 0
          %1119 = vmatpush2.bf16.xpose.msra.mxu0 0
          %1120 = vmatprep.subr.bf16.mxu0 0
          %1121 = vmatpush2.bf16.xpose.msra.mxu0 0
          %1122 = vmatprep.subr.bf16.mxu0 0
          %1123 = vmatpush2.bf16.xpose.msra.mxu0 0
          %1124 = vmatprep.subr.bf16.mxu0 0
          %1125 = vmatpush2.bf16.xpose.msra.mxu0 0
          %1126 = vmatprep.mubr.bf16.mxu0 0
          %1127 = vmatmul.mubr.bf16.gmra.mxu0 %v1092
          %v1128 = vpop.f32.mrf.mxu0
          %v1129 = vadd.f32 0.0, %v1128
          %v1130 = vpop.f32.mrf.mxu0
          %v1131 = vpop.f32.mrf.mxu0
          %v1132 = vpop.f32.mrf.mxu0
          %1133 = vdwg.mxu0
          %v1134 = vpack.i.b16 %v946, %v946
          %v1135 = vlaneseq
          %v1136 = vshrl.u32 %v1135, 7
          %v1137 = vsub.s32 0, %v1136
          %v1138 = vrot.slane %v1134, %v1137
          %1140 = vmatprep.subr.bf16.mxu0 0
          %1141 = vmatpush1.bf16.xpose.msra.mxu0 0
          %1142 = vmatprep.subr.bf16.mxu0 0
          %1143 = vmatpush1.bf16.xpose.msra.mxu0 0
          %1144 = vmatprep.subr.bf16.mxu0 0
          %1145 = vmatpush1.bf16.xpose.msra.mxu0 0
          %1146 = vmatprep.subr.bf16.mxu0 0
          %1147 = vmatpush1.bf16.xpose.msra.mxu0 0
          %1148 = vmatprep.subr.bf16.mxu0 0
          %1149 = vmatpush1.bf16.xpose.msra.mxu0 0
          %1150 = vmatprep.subr.bf16.mxu0 0
          %1151 = vmatpush1.bf16.xpose.msra.mxu0 0
          %1152 = vmatprep.subr.bf16.mxu0 0
          %1153 = vmatpush1.bf16.xpose.msra.mxu0 0
          %1154 = vmatprep.subr.bf16.mxu0 0
          %1155 = vmatpush1.bf16.xpose.msra.mxu0 %v912
          %1156 = vmatprep.subr.bf16.mxu0 0
          %1157 = vmatpush2.bf16.xpose.msra.mxu0 0
          %1158 = vmatprep.subr.bf16.mxu0 0
          %1159 = vmatpush2.bf16.xpose.msra.mxu0 0
          %1160 = vmatprep.subr.bf16.mxu0 0
          %1161 = vmatpush2.bf16.xpose.msra.mxu0 0
          %1162 = vmatprep.subr.bf16.mxu0 0
          %1163 = vmatpush2.bf16.xpose.msra.mxu0 0
          %1164 = vmatprep.subr.bf16.mxu0 0
          %1165 = vmatpush2.bf16.xpose.msra.mxu0 0
          %1166 = vmatprep.subr.bf16.mxu0 0
          %1167 = vmatpush2.bf16.xpose.msra.mxu0 0
          %1168 = vmatprep.subr.bf16.mxu0 0
          %1169 = vmatpush2.bf16.xpose.msra.mxu0 0
          %1170 = vmatprep.subr.bf16.mxu0 0
          %1171 = vmatpush2.bf16.xpose.msra.mxu0 0
          %1172 = vmatprep.mubr.bf16.mxu0 0
          %1173 = vmatmul.mubr.bf16.gmra.mxu0 %v1138
          %v1174 = vpop.f32.mrf.mxu0
          %v1175 = vadd.f32 0.0, %v1174
          %v1176 = vpop.f32.mrf.mxu0
          %v1177 = vpop.f32.mrf.mxu0
          %v1178 = vpop.f32.mrf.mxu0
          %1179 = vdwg.mxu0
          %v1180 = vpack.i.b16 %v947, %v947
          %v1181 = vlaneseq
          %v1182 = vshrl.u32 %v1181, 7
          %v1183 = vsub.s32 0, %v1182
          %v1184 = vrot.slane %v1180, %v1183
          %1186 = vmatprep.subr.bf16.mxu0 0
          %1187 = vmatpush1.bf16.xpose.msra.mxu0 0
          %1188 = vmatprep.subr.bf16.mxu0 0
          %1189 = vmatpush1.bf16.xpose.msra.mxu0 0
          %1190 = vmatprep.subr.bf16.mxu0 0
          %1191 = vmatpush1.bf16.xpose.msra.mxu0 0
          %1192 = vmatprep.subr.bf16.mxu0 0
          %1193 = vmatpush1.bf16.xpose.msra.mxu0 0
          %1194 = vmatprep.subr.bf16.mxu0 0
          %1195 = vmatpush1.bf16.xpose.msra.mxu0 0
          %1196 = vmatprep.subr.bf16.mxu0 0
          %1197 = vmatpush1.bf16.xpose.msra.mxu0 0
          %1198 = vmatprep.subr.bf16.mxu0 0
          %1199 = vmatpush1.bf16.xpose.msra.mxu0 0
          %1200 = vmatprep.subr.bf16.mxu0 0
          %1201 = vmatpush1.bf16.xpose.msra.mxu0 %v913
          %1202 = vmatprep.subr.bf16.mxu0 0
          %1203 = vmatpush2.bf16.xpose.msra.mxu0 0
          %1204 = vmatprep.subr.bf16.mxu0 0
          %1205 = vmatpush2.bf16.xpose.msra.mxu0 0
          %1206 = vmatprep.subr.bf16.mxu0 0
          %1207 = vmatpush2.bf16.xpose.msra.mxu0 0
          %1208 = vmatprep.subr.bf16.mxu0 0
          %1209 = vmatpush2.bf16.xpose.msra.mxu0 0
          %1210 = vmatprep.subr.bf16.mxu0 0
          %1211 = vmatpush2.bf16.xpose.msra.mxu0 0
          %1212 = vmatprep.subr.bf16.mxu0 0
          %1213 = vmatpush2.bf16.xpose.msra.mxu0 0
          %1214 = vmatprep.subr.bf16.mxu0 0
          %1215 = vmatpush2.bf16.xpose.msra.mxu0 0
          %1216 = vmatprep.subr.bf16.mxu0 0
          %1217 = vmatpush2.bf16.xpose.msra.mxu0 0
          %1218 = vmatprep.mubr.bf16.mxu0 0
          %1219 = vmatmul.mubr.bf16.gmra.mxu0 %v1184
          %v1220 = vpop.f32.mrf.mxu0
          %v1221 = vadd.f32 0.0, %v1220
          %v1222 = vpop.f32.mrf.mxu0
          %v1223 = vpop.f32.mrf.mxu0
          %v1224 = vpop.f32.mrf.mxu0
          %1225 = vdwg.mxu0
          %v1226 = vpack.i.b16 %v948, %v948
          %v1227 = vlaneseq
          %v1228 = vshrl.u32 %v1227, 7
          %v1229 = vsub.s32 0, %v1228
          %v1230 = vrot.slane %v1226, %v1229
          %1232 = vmatprep.subr.bf16.mxu0 0
          %1233 = vmatpush1.bf16.xpose.msra.mxu0 0
          %1234 = vmatprep.subr.bf16.mxu0 0
          %1235 = vmatpush1.bf16.xpose.msra.mxu0 0
          %1236 = vmatprep.subr.bf16.mxu0 0
          %1237 = vmatpush1.bf16.xpose.msra.mxu0 0
          %1238 = vmatprep.subr.bf16.mxu0 0
          %1239 = vmatpush1.bf16.xpose.msra.mxu0 0
          %1240 = vmatprep.subr.bf16.mxu0 0
          %1241 = vmatpush1.bf16.xpose.msra.mxu0 0
          %1242 = vmatprep.subr.bf16.mxu0 0
          %1243 = vmatpush1.bf16.xpose.msra.mxu0 0
          %1244 = vmatprep.subr.bf16.mxu0 0
          %1245 = vmatpush1.bf16.xpose.msra.mxu0 0
          %1246 = vmatprep.subr.bf16.mxu0 0
          %1247 = vmatpush1.bf16.xpose.msra.mxu0 %v914
          %1248 = vmatprep.subr.bf16.mxu0 0
          %1249 = vmatpush2.bf16.xpose.msra.mxu0 0
          %1250 = vmatprep.subr.bf16.mxu0 0
          %1251 = vmatpush2.bf16.xpose.msra.mxu0 0
          %1252 = vmatprep.subr.bf16.mxu0 0
          %1253 = vmatpush2.bf16.xpose.msra.mxu0 0
          %1254 = vmatprep.subr.bf16.mxu0 0
          %1255 = vmatpush2.bf16.xpose.msra.mxu0 0
          %1256 = vmatprep.subr.bf16.mxu0 0
          %1257 = vmatpush2.bf16.xpose.msra.mxu0 0
          %1258 = vmatprep.subr.bf16.mxu0 0
          %1259 = vmatpush2.bf16.xpose.msra.mxu0 0
          %1260 = vmatprep.subr.bf16.mxu0 0
          %1261 = vmatpush2.bf16.xpose.msra.mxu0 0
          %1262 = vmatprep.subr.bf16.mxu0 0
          %1263 = vmatpush2.bf16.xpose.msra.mxu0 0
          %1264 = vmatprep.mubr.bf16.mxu0 0
          %1265 = vmatmul.mubr.bf16.gmra.mxu0 %v1230
          %v1266 = vpop.f32.mrf.mxu0
          %v1267 = vadd.f32 0.0, %v1266
          %v1268 = vpop.f32.mrf.mxu0
          %v1269 = vpop.f32.mrf.mxu0
          %v1270 = vpop.f32.mrf.mxu0
          %1271 = vdwg.mxu0
          %v1272 = vpack.i.b16 %v949, %v949
          %v1273 = vlaneseq
          %v1274 = vshrl.u32 %v1273, 7
          %v1275 = vsub.s32 0, %v1274
          %v1276 = vrot.slane %v1272, %v1275
          %1278 = vmatprep.subr.bf16.mxu0 0
          %1279 = vmatpush1.bf16.xpose.msra.mxu0 0
          %1280 = vmatprep.subr.bf16.mxu0 0
          %1281 = vmatpush1.bf16.xpose.msra.mxu0 0
          %1282 = vmatprep.subr.bf16.mxu0 0
          %1283 = vmatpush1.bf16.xpose.msra.mxu0 0
          %1284 = vmatprep.subr.bf16.mxu0 0
          %1285 = vmatpush1.bf16.xpose.msra.mxu0 0
          %1286 = vmatprep.subr.bf16.mxu0 0
          %1287 = vmatpush1.bf16.xpose.msra.mxu0 0
          %1288 = vmatprep.subr.bf16.mxu0 0
          %1289 = vmatpush1.bf16.xpose.msra.mxu0 0
          %1290 = vmatprep.subr.bf16.mxu0 0
          %1291 = vmatpush1.bf16.xpose.msra.mxu0 0
          %1292 = vmatprep.subr.bf16.mxu0 0
          %1293 = vmatpush1.bf16.xpose.msra.mxu0 %v915
          %1294 = vmatprep.subr.bf16.mxu0 0
          %1295 = vmatpush2.bf16.xpose.msra.mxu0 0
          %1296 = vmatprep.subr.bf16.mxu0 0
          %1297 = vmatpush2.bf16.xpose.msra.mxu0 0
          %1298 = vmatprep.subr.bf16.mxu0 0
          %1299 = vmatpush2.bf16.xpose.msra.mxu0 0
          %1300 = vmatprep.subr.bf16.mxu0 0
          %1301 = vmatpush2.bf16.xpose.msra.mxu0 0
          %1302 = vmatprep.subr.bf16.mxu0 0
          %1303 = vmatpush2.bf16.xpose.msra.mxu0 0
          %1304 = vmatprep.subr.bf16.mxu0 0
          %1305 = vmatpush2.bf16.xpose.msra.mxu0 0
          %1306 = vmatprep.subr.bf16.mxu0 0
          %1307 = vmatpush2.bf16.xpose.msra.mxu0 0
          %1308 = vmatprep.subr.bf16.mxu0 0
          %1309 = vmatpush2.bf16.xpose.msra.mxu0 0
          %1310 = vmatprep.mubr.bf16.mxu0 0
          %1311 = vmatmul.mubr.bf16.gmra.mxu0 %v1276
          %v1312 = vpop.f32.mrf.mxu0
          %v1313 = vadd.f32 0.0, %v1312
          %v1314 = vpop.f32.mrf.mxu0
          %v1315 = vpop.f32.mrf.mxu0
          %v1316 = vpop.f32.mrf.mxu0
          %1317 = vdwg.mxu0
          %v1326 = vrot.slane %v1037, 7
          %vm1327 = vcmask 1041409
          %v1328 = vsel %vm1327, %v1326, %v991
          %v1329 = vrot.slane %v1083, 6
          %vm1330 = vcmask 1042434
          %v1331 = vsel %vm1330, %v1329, %v1328
          %v1332 = vrot.slane %v1129, 5
          %vm1333 = vcmask 1043459
          %v1334 = vsel %vm1333, %v1332, %v1331
          %v1335 = vrot.slane %v1175, 4
          %vm1336 = vcmask 1044484
          %v1337 = vsel %vm1336, %v1335, %v1334
          %v1338 = vrot.slane %v1221, 3
          %vm1339 = vcmask 1045509
          %v1340 = vsel %vm1339, %v1338, %v1337
          %v1341 = vrot.slane %v1267, 2
          %vm1342 = vcmask 1046534
          %v1343 = vsel %vm1342, %v1341, %v1340
          %v1344 = vrot.slane %v1313, 1
          %vm1345 = vcmask 1047559
          %v1346 = vsel %vm1345, %v1344, %v1343
          %vm1348 = vcmask 64512
          %v1349 = vsel %vm1348, %v1346, -inf
          %1350 = vmax.xlane.f32.xlu0 %v1349
          %v1351 = vpop.xlane.xlu0 %1350
          %v1353 = vrot.slane %v1351, 1
          %v1354 = vrot.slane %v1351, 2
          %v1355 = vrot.slane %v1351, 3
          %v1356 = vrot.slane %v1351, 4
          %v1357 = vrot.slane %v1351, 5
          %v1358 = vrot.slane %v1351, 6
          %v1359 = vrot.slane %v1351, 7
          %v1368 = vsub.f32 %v991, %v1351
          %v1369 = vsub.f32 %v1037, %v1353
          %v1370 = vsub.f32 %v1083, %v1354
          %v1371 = vsub.f32 %v1129, %v1355
          %v1372 = vsub.f32 %v1175, %v1356
          %v1373 = vsub.f32 %v1221, %v1357
          %v1374 = vsub.f32 %v1267, %v1358
          %v1375 = vsub.f32 %v1313, %v1359
          %v1376 = vmul.f32 %v1368, 1.442695
          %v1377 = vpow.pop %v1376
          %v1378 = vmul.f32 %v1369, 1.442695
          %v1379 = vpow.pop %v1378
          %v1380 = vmul.f32 %v1370, 1.442695
          %v1381 = vpow.pop %v1380
          %v1382 = vmul.f32 %v1371, 1.442695
          %v1383 = vpow.pop %v1382
          %v1384 = vmul.f32 %v1372, 1.442695
          %v1385 = vpow.pop %v1384
          %v1386 = vmul.f32 %v1373, 1.442695
          %v1387 = vpow.pop %v1386
          %v1388 = vmul.f32 %v1374, 1.442695
          %v1389 = vpow.pop %v1388
          %v1390 = vmul.f32 %v1375, 1.442695
          %v1391 = vpow.pop %v1390
          %v1400 = vrot.slane %v1379, 7
          %v1401 = vsel %vm1327, %v1400, %v1377
          %v1402 = vrot.slane %v1381, 6
          %v1403 = vsel %vm1330, %v1402, %v1401
          %v1404 = vrot.slane %v1383, 5
          %v1405 = vsel %vm1333, %v1404, %v1403
          %v1406 = vrot.slane %v1385, 4
          %v1407 = vsel %vm1336, %v1406, %v1405
          %v1408 = vrot.slane %v1387, 3
          %v1409 = vsel %vm1339, %v1408, %v1407
          %v1410 = vrot.slane %v1389, 2
          %v1411 = vsel %vm1342, %v1410, %v1409
          %v1412 = vrot.slane %v1391, 1
          %v1413 = vsel %vm1345, %v1412, %v1411
          %v1415 = vsel %vm1348, %v1413, 0.0
          %1416 = vadd.xlane.f32.xlu0 %v1415
          %v1417 = vpop.xlane.xlu0 %1416
          %v1418 = vrcp.pop %v1417
          %v1420 = vrot.slane %v1418, 1
          %v1421 = vrot.slane %v1418, 2
          %v1422 = vrot.slane %v1418, 3
          %v1423 = vrot.slane %v1418, 4
          %v1424 = vrot.slane %v1418, 5
          %v1425 = vrot.slane %v1418, 6
          %v1426 = vrot.slane %v1418, 7
          %v1435 = vmul.f32 %v1377, %v1418
          %v1436 = vmul.f32 %v1379, %v1420
          %v1437 = vmul.f32 %v1381, %v1421
          %v1438 = vmul.f32 %v1383, %v1422
          %v1439 = vmul.f32 %v1385, %v1423
          %v1440 = vmul.f32 %v1387, %v1424
          %v1441 = vmul.f32 %v1389, %v1425
          %v1442 = vmul.f32 %v1391, %v1426
          %v1443 = vpack.c.bf16 %v1435, %v1435
          %v1444 = vpack.c.bf16 %v1436, %v1436
          %v1445 = vpack.c.bf16 %v1437, %v1437
          %v1446 = vpack.c.bf16 %v1438, %v1438
          %v1447 = vpack.c.bf16 %v1439, %v1439
          %v1448 = vpack.c.bf16 %v1440, %v1440
          %v1449 = vpack.c.bf16 %v1441, %v1441
          %v1450 = vpack.c.bf16 %v1442, %v1442
          %v1452 = vsel %vm1348, %v1443, 0
          %vm1454 = vcmask 1043456
          %v1456 = vsel %vm1454, %v908, 0
          %1458 = vmatprep.subr.bf16.mxu0 0
          %1459 = vmatpush1.bf16.msra.mxu0 0
          %1460 = vmatprep.subr.bf16.mxu0 0
          %1461 = vmatpush1.bf16.msra.mxu0 0
          %1462 = vmatprep.subr.bf16.mxu0 0
          %1463 = vmatpush1.bf16.msra.mxu0 0
          %1464 = vmatprep.subr.bf16.mxu0 0
          %1465 = vmatpush1.bf16.msra.mxu0 0
          %1466 = vmatprep.subr.bf16.mxu0 0
          %1467 = vmatpush1.bf16.msra.mxu0 0
          %1468 = vmatprep.subr.bf16.mxu0 0
          %1469 = vmatpush1.bf16.msra.mxu0 0
          %1470 = vmatprep.subr.bf16.mxu0 0
          %1471 = vmatpush1.bf16.msra.mxu0 0
          %1472 = vmatprep.subr.bf16.mxu0 0
          %1473 = vmatpush1.bf16.msra.mxu0 %v1456
          %1474 = vmatprep.subr.bf16.mxu0 0
          %1475 = vmatpush2.bf16.msra.mxu0 0
          %1476 = vmatprep.subr.bf16.mxu0 0
          %1477 = vmatpush2.bf16.msra.mxu0 0
          %1478 = vmatprep.subr.bf16.mxu0 0
          %1479 = vmatpush2.bf16.msra.mxu0 0
          %1480 = vmatprep.subr.bf16.mxu0 0
          %1481 = vmatpush2.bf16.msra.mxu0 0
          %1482 = vmatprep.subr.bf16.mxu0 0
          %1483 = vmatpush2.bf16.msra.mxu0 0
          %1484 = vmatprep.subr.bf16.mxu0 0
          %1485 = vmatpush2.bf16.msra.mxu0 0
          %1486 = vmatprep.subr.bf16.mxu0 0
          %1487 = vmatpush2.bf16.msra.mxu0 0
          %1488 = vmatprep.subr.bf16.mxu0 0
          %1489 = vmatpush2.bf16.msra.mxu0 0
          %1490 = vmatprep.mubr.bf16.mxu0 0
          %1491 = vmatmul.mubr.bf16.gmra.mxu0 %v1452
          %v1492 = vpop.f32.mrf.mxu0
          %v1493 = vadd.f32 0.0, %v1492
          %v1494 = vpop.f32.mrf.mxu0
          %v1495 = vpop.f32.mrf.mxu0
          %v1496 = vpop.f32.mrf.mxu0
          %1497 = vdwg.mxu0
          %v1499 = vsel %vm1348, %v1444, 0
          %v1502 = vsel %vm1454, %v909, 0
          %1504 = vmatprep.subr.bf16.mxu0 0
          %1505 = vmatpush1.bf16.msra.mxu0 0
          %1506 = vmatprep.subr.bf16.mxu0 0
          %1507 = vmatpush1.bf16.msra.mxu0 0
          %1508 = vmatprep.subr.bf16.mxu0 0
          %1509 = vmatpush1.bf16.msra.mxu0 0
          %1510 = vmatprep.subr.bf16.mxu0 0
          %1511 = vmatpush1.bf16.msra.mxu0 0
          %1512 = vmatprep.subr.bf16.mxu0 0
          %1513 = vmatpush1.bf16.msra.mxu0 0
          %1514 = vmatprep.subr.bf16.mxu0 0
          %1515 = vmatpush1.bf16.msra.mxu0 0
          %1516 = vmatprep.subr.bf16.mxu0 0
          %1517 = vmatpush1.bf16.msra.mxu0 0
          %1518 = vmatprep.subr.bf16.mxu0 0
          %1519 = vmatpush1.bf16.msra.mxu0 %v1502
          %1520 = vmatprep.subr.bf16.mxu0 0
          %1521 = vmatpush2.bf16.msra.mxu0 0
          %1522 = vmatprep.subr.bf16.mxu0 0
          %1523 = vmatpush2.bf16.msra.mxu0 0
          %1524 = vmatprep.subr.bf16.mxu0 0
          %1525 = vmatpush2.bf16.msra.mxu0 0
          %1526 = vmatprep.subr.bf16.mxu0 0
          %1527 = vmatpush2.bf16.msra.mxu0 0
          %1528 = vmatprep.subr.bf16.mxu0 0
          %1529 = vmatpush2.bf16.msra.mxu0 0
          %1530 = vmatprep.subr.bf16.mxu0 0
          %1531 = vmatpush2.bf16.msra.mxu0 0
          %1532 = vmatprep.subr.bf16.mxu0 0
          %1533 = vmatpush2.bf16.msra.mxu0 0
          %1534 = vmatprep.subr.bf16.mxu0 0
          %1535 = vmatpush2.bf16.msra.mxu0 0
          %1536 = vmatprep.mubr.bf16.mxu0 0
          %1537 = vmatmul.mubr.bf16.gmra.mxu0 %v1499
          %v1538 = vpop.f32.mrf.mxu0
          %v1539 = vadd.f32 0.0, %v1538
          %v1540 = vpop.f32.mrf.mxu0
          %v1541 = vpop.f32.mrf.mxu0
          %v1542 = vpop.f32.mrf.mxu0
          %1543 = vdwg.mxu0
          %v1545 = vsel %vm1348, %v1445, 0
          %v1548 = vsel %vm1454, %v910, 0
          %1550 = vmatprep.subr.bf16.mxu0 0
          %1551 = vmatpush1.bf16.msra.mxu0 0
          %1552 = vmatprep.subr.bf16.mxu0 0
          %1553 = vmatpush1.bf16.msra.mxu0 0
          %1554 = vmatprep.subr.bf16.mxu0 0
          %1555 = vmatpush1.bf16.msra.mxu0 0
          %1556 = vmatprep.subr.bf16.mxu0 0
          %1557 = vmatpush1.bf16.msra.mxu0 0
          %1558 = vmatprep.subr.bf16.mxu0 0
          %1559 = vmatpush1.bf16.msra.mxu0 0
          %1560 = vmatprep.subr.bf16.mxu0 0
          %1561 = vmatpush1.bf16.msra.mxu0 0
          %1562 = vmatprep.subr.bf16.mxu0 0
          %1563 = vmatpush1.bf16.msra.mxu0 0
          %1564 = vmatprep.subr.bf16.mxu0 0
          %1565 = vmatpush1.bf16.msra.mxu0 %v1548
          %1566 = vmatprep.subr.bf16.mxu0 0
          %1567 = vmatpush2.bf16.msra.mxu0 0
          %1568 = vmatprep.subr.bf16.mxu0 0
          %1569 = vmatpush2.bf16.msra.mxu0 0
          %1570 = vmatprep.subr.bf16.mxu0 0
          %1571 = vmatpush2.bf16.msra.mxu0 0
          %1572 = vmatprep.subr.bf16.mxu0 0
          %1573 = vmatpush2.bf16.msra.mxu0 0
          %1574 = vmatprep.subr.bf16.mxu0 0
          %1575 = vmatpush2.bf16.msra.mxu0 0
          %1576 = vmatprep.subr.bf16.mxu0 0
          %1577 = vmatpush2.bf16.msra.mxu0 0
          %1578 = vmatprep.subr.bf16.mxu0 0
          %1579 = vmatpush2.bf16.msra.mxu0 0
          %1580 = vmatprep.subr.bf16.mxu0 0
          %1581 = vmatpush2.bf16.msra.mxu0 0
          %1582 = vmatprep.mubr.bf16.mxu0 0
          %1583 = vmatmul.mubr.bf16.gmra.mxu0 %v1545
          %v1584 = vpop.f32.mrf.mxu0
          %v1585 = vadd.f32 0.0, %v1584
          %v1586 = vpop.f32.mrf.mxu0
          %v1587 = vpop.f32.mrf.mxu0
          %v1588 = vpop.f32.mrf.mxu0
          %1589 = vdwg.mxu0
          %v1591 = vsel %vm1348, %v1446, 0
          %v1594 = vsel %vm1454, %v911, 0
          %1596 = vmatprep.subr.bf16.mxu0 0
          %1597 = vmatpush1.bf16.msra.mxu0 0
          %1598 = vmatprep.subr.bf16.mxu0 0
          %1599 = vmatpush1.bf16.msra.mxu0 0
          %1600 = vmatprep.subr.bf16.mxu0 0
          %1601 = vmatpush1.bf16.msra.mxu0 0
          %1602 = vmatprep.subr.bf16.mxu0 0
          %1603 = vmatpush1.bf16.msra.mxu0 0
          %1604 = vmatprep.subr.bf16.mxu0 0
          %1605 = vmatpush1.bf16.msra.mxu0 0
          %1606 = vmatprep.subr.bf16.mxu0 0
          %1607 = vmatpush1.bf16.msra.mxu0 0
          %1608 = vmatprep.subr.bf16.mxu0 0
          %1609 = vmatpush1.bf16.msra.mxu0 0
          %1610 = vmatprep.subr.bf16.mxu0 0
          %1611 = vmatpush1.bf16.msra.mxu0 %v1594
          %1612 = vmatprep.subr.bf16.mxu0 0
          %1613 = vmatpush2.bf16.msra.mxu0 0
          %1614 = vmatprep.subr.bf16.mxu0 0
          %1615 = vmatpush2.bf16.msra.mxu0 0
          %1616 = vmatprep.subr.bf16.mxu0 0
          %1617 = vmatpush2.bf16.msra.mxu0 0
          %1618 = vmatprep.subr.bf16.mxu0 0
          %1619 = vmatpush2.bf16.msra.mxu0 0
          %1620 = vmatprep.subr.bf16.mxu0 0
          %1621 = vmatpush2.bf16.msra.mxu0 0
          %1622 = vmatprep.subr.bf16.mxu0 0
          %1623 = vmatpush2.bf16.msra.mxu0 0
          %1624 = vmatprep.subr.bf16.mxu0 0
          %1625 = vmatpush2.bf16.msra.mxu0 0
          %1626 = vmatprep.subr.bf16.mxu0 0
          %1627 = vmatpush2.bf16.msra.mxu0 0
          %1628 = vmatprep.mubr.bf16.mxu0 0
          %1629 = vmatmul.mubr.bf16.gmra.mxu0 %v1591
          %v1630 = vpop.f32.mrf.mxu0
          %v1631 = vadd.f32 0.0, %v1630
          %v1632 = vpop.f32.mrf.mxu0
          %v1633 = vpop.f32.mrf.mxu0
          %v1634 = vpop.f32.mrf.mxu0
          %1635 = vdwg.mxu0
          %v1637 = vsel %vm1348, %v1447, 0
          %v1640 = vsel %vm1454, %v912, 0
          %1642 = vmatprep.subr.bf16.mxu0 0
          %1643 = vmatpush1.bf16.msra.mxu0 0
          %1644 = vmatprep.subr.bf16.mxu0 0
          %1645 = vmatpush1.bf16.msra.mxu0 0
          %1646 = vmatprep.subr.bf16.mxu0 0
          %1647 = vmatpush1.bf16.msra.mxu0 0
          %1648 = vmatprep.subr.bf16.mxu0 0
          %1649 = vmatpush1.bf16.msra.mxu0 0
          %1650 = vmatprep.subr.bf16.mxu0 0
          %1651 = vmatpush1.bf16.msra.mxu0 0
          %1652 = vmatprep.subr.bf16.mxu0 0
          %1653 = vmatpush1.bf16.msra.mxu0 0
          %1654 = vmatprep.subr.bf16.mxu0 0
          %1655 = vmatpush1.bf16.msra.mxu0 0
          %1656 = vmatprep.subr.bf16.mxu0 0
          %1657 = vmatpush1.bf16.msra.mxu0 %v1640
          %1658 = vmatprep.subr.bf16.mxu0 0
          %1659 = vmatpush2.bf16.msra.mxu0 0
          %1660 = vmatprep.subr.bf16.mxu0 0
          %1661 = vmatpush2.bf16.msra.mxu0 0
          %1662 = vmatprep.subr.bf16.mxu0 0
          %1663 = vmatpush2.bf16.msra.mxu0 0
          %1664 = vmatprep.subr.bf16.mxu0 0
          %1665 = vmatpush2.bf16.msra.mxu0 0
          %1666 = vmatprep.subr.bf16.mxu0 0
          %1667 = vmatpush2.bf16.msra.mxu0 0
          %1668 = vmatprep.subr.bf16.mxu0 0
          %1669 = vmatpush2.bf16.msra.mxu0 0
          %1670 = vmatprep.subr.bf16.mxu0 0
          %1671 = vmatpush2.bf16.msra.mxu0 0
          %1672 = vmatprep.subr.bf16.mxu0 0
          %1673 = vmatpush2.bf16.msra.mxu0 0
          %1674 = vmatprep.mubr.bf16.mxu0 0
          %1675 = vmatmul.mubr.bf16.gmra.mxu0 %v1637
          %v1676 = vpop.f32.mrf.mxu0
          %v1677 = vadd.f32 0.0, %v1676
          %v1678 = vpop.f32.mrf.mxu0
          %v1679 = vpop.f32.mrf.mxu0
          %v1680 = vpop.f32.mrf.mxu0
          %1681 = vdwg.mxu0
          %v1683 = vsel %vm1348, %v1448, 0
          %v1686 = vsel %vm1454, %v913, 0
          %1688 = vmatprep.subr.bf16.mxu0 0
          %1689 = vmatpush1.bf16.msra.mxu0 0
          %1690 = vmatprep.subr.bf16.mxu0 0
          %1691 = vmatpush1.bf16.msra.mxu0 0
          %1692 = vmatprep.subr.bf16.mxu0 0
          %1693 = vmatpush1.bf16.msra.mxu0 0
          %1694 = vmatprep.subr.bf16.mxu0 0
          %1695 = vmatpush1.bf16.msra.mxu0 0
          %1696 = vmatprep.subr.bf16.mxu0 0
          %1697 = vmatpush1.bf16.msra.mxu0 0
          %1698 = vmatprep.subr.bf16.mxu0 0
          %1699 = vmatpush1.bf16.msra.mxu0 0
          %1700 = vmatprep.subr.bf16.mxu0 0
          %1701 = vmatpush1.bf16.msra.mxu0 0
          %1702 = vmatprep.subr.bf16.mxu0 0
          %1703 = vmatpush1.bf16.msra.mxu0 %v1686
          %1704 = vmatprep.subr.bf16.mxu0 0
          %1705 = vmatpush2.bf16.msra.mxu0 0
          %1706 = vmatprep.subr.bf16.mxu0 0
          %1707 = vmatpush2.bf16.msra.mxu0 0
          %1708 = vmatprep.subr.bf16.mxu0 0
          %1709 = vmatpush2.bf16.msra.mxu0 0
          %1710 = vmatprep.subr.bf16.mxu0 0
          %1711 = vmatpush2.bf16.msra.mxu0 0
          %1712 = vmatprep.subr.bf16.mxu0 0
          %1713 = vmatpush2.bf16.msra.mxu0 0
          %1714 = vmatprep.subr.bf16.mxu0 0
          %1715 = vmatpush2.bf16.msra.mxu0 0
          %1716 = vmatprep.subr.bf16.mxu0 0
          %1717 = vmatpush2.bf16.msra.mxu0 0
          %1718 = vmatprep.subr.bf16.mxu0 0
          %1719 = vmatpush2.bf16.msra.mxu0 0
          %1720 = vmatprep.mubr.bf16.mxu0 0
          %1721 = vmatmul.mubr.bf16.gmra.mxu0 %v1683
          %v1722 = vpop.f32.mrf.mxu0
          %v1723 = vadd.f32 0.0, %v1722
          %v1724 = vpop.f32.mrf.mxu0
          %v1725 = vpop.f32.mrf.mxu0
          %v1726 = vpop.f32.mrf.mxu0
          %1727 = vdwg.mxu0
          %v1729 = vsel %vm1348, %v1449, 0
          %v1732 = vsel %vm1454, %v914, 0
          %1734 = vmatprep.subr.bf16.mxu0 0
          %1735 = vmatpush1.bf16.msra.mxu0 0
          %1736 = vmatprep.subr.bf16.mxu0 0
          %1737 = vmatpush1.bf16.msra.mxu0 0
          %1738 = vmatprep.subr.bf16.mxu0 0
          %1739 = vmatpush1.bf16.msra.mxu0 0
          %1740 = vmatprep.subr.bf16.mxu0 0
          %1741 = vmatpush1.bf16.msra.mxu0 0
          %1742 = vmatprep.subr.bf16.mxu0 0
          %1743 = vmatpush1.bf16.msra.mxu0 0
          %1744 = vmatprep.subr.bf16.mxu0 0
          %1745 = vmatpush1.bf16.msra.mxu0 0
          %1746 = vmatprep.subr.bf16.mxu0 0
          %1747 = vmatpush1.bf16.msra.mxu0 0
          %1748 = vmatprep.subr.bf16.mxu0 0
          %1749 = vmatpush1.bf16.msra.mxu0 %v1732
          %1750 = vmatprep.subr.bf16.mxu0 0
          %1751 = vmatpush2.bf16.msra.mxu0 0
          %1752 = vmatprep.subr.bf16.mxu0 0
          %1753 = vmatpush2.bf16.msra.mxu0 0
          %1754 = vmatprep.subr.bf16.mxu0 0
          %1755 = vmatpush2.bf16.msra.mxu0 0
          %1756 = vmatprep.subr.bf16.mxu0 0
          %1757 = vmatpush2.bf16.msra.mxu0 0
          %1758 = vmatprep.subr.bf16.mxu0 0
          %1759 = vmatpush2.bf16.msra.mxu0 0
          %1760 = vmatprep.subr.bf16.mxu0 0
          %1761 = vmatpush2.bf16.msra.mxu0 0
          %1762 = vmatprep.subr.bf16.mxu0 0
          %1763 = vmatpush2.bf16.msra.mxu0 0
          %1764 = vmatprep.subr.bf16.mxu0 0
          %1765 = vmatpush2.bf16.msra.mxu0 0
          %1766 = vmatprep.mubr.bf16.mxu0 0
          %1767 = vmatmul.mubr.bf16.gmra.mxu0 %v1729
          %v1768 = vpop.f32.mrf.mxu0
          %v1769 = vadd.f32 0.0, %v1768
          %v1770 = vpop.f32.mrf.mxu0
          %v1771 = vpop.f32.mrf.mxu0
          %v1772 = vpop.f32.mrf.mxu0
          %1773 = vdwg.mxu0
          %v1775 = vsel %vm1348, %v1450, 0
          %v1778 = vsel %vm1454, %v915, 0
          %1780 = vmatprep.subr.bf16.mxu0 0
          %1781 = vmatpush1.bf16.msra.mxu0 0
          %1782 = vmatprep.subr.bf16.mxu0 0
          %1783 = vmatpush1.bf16.msra.mxu0 0
          %1784 = vmatprep.subr.bf16.mxu0 0
          %1785 = vmatpush1.bf16.msra.mxu0 0
          %1786 = vmatprep.subr.bf16.mxu0 0
          %1787 = vmatpush1.bf16.msra.mxu0 0
          %1788 = vmatprep.subr.bf16.mxu0 0
          %1789 = vmatpush1.bf16.msra.mxu0 0
          %1790 = vmatprep.subr.bf16.mxu0 0
          %1791 = vmatpush1.bf16.msra.mxu0 0
          %1792 = vmatprep.subr.bf16.mxu0 0
          %1793 = vmatpush1.bf16.msra.mxu0 0
          %1794 = vmatprep.subr.bf16.mxu0 0
          %1795 = vmatpush1.bf16.msra.mxu0 %v1778
          %1796 = vmatprep.subr.bf16.mxu0 0
          %1797 = vmatpush2.bf16.msra.mxu0 0
          %1798 = vmatprep.subr.bf16.mxu0 0
          %1799 = vmatpush2.bf16.msra.mxu0 0
          %1800 = vmatprep.subr.bf16.mxu0 0
          %1801 = vmatpush2.bf16.msra.mxu0 0
          %1802 = vmatprep.subr.bf16.mxu0 0
          %1803 = vmatpush2.bf16.msra.mxu0 0
          %1804 = vmatprep.subr.bf16.mxu0 0
          %1805 = vmatpush2.bf16.msra.mxu0 0
          %1806 = vmatprep.subr.bf16.mxu0 0
          %1807 = vmatpush2.bf16.msra.mxu0 0
          %1808 = vmatprep.subr.bf16.mxu0 0
          %1809 = vmatpush2.bf16.msra.mxu0 0
          %1810 = vmatprep.subr.bf16.mxu0 0
          %1811 = vmatpush2.bf16.msra.mxu0 0
          %1812 = vmatprep.mubr.bf16.mxu0 0
          %1813 = vmatmul.mubr.bf16.gmra.mxu0 %v1775
          %v1814 = vpop.f32.mrf.mxu0
          %v1815 = vadd.f32 0.0, %v1814
          %v1816 = vpop.f32.mrf.mxu0
          %v1817 = vpop.f32.mrf.mxu0
          %v1818 = vpop.f32.mrf.mxu0
          %1819 = vdwg.mxu0
          %v1828 = vrot.slane %v1539, 7
          %v1829 = vsel %vm1327, %v1828, %v1493
          %v1830 = vrot.slane %v1585, 6
          %v1831 = vsel %vm1330, %v1830, %v1829
          %v1832 = vrot.slane %v1631, 5
          %v1833 = vsel %vm1333, %v1832, %v1831
          %v1834 = vrot.slane %v1677, 4
          %v1835 = vsel %vm1336, %v1834, %v1833
          %v1836 = vrot.slane %v1723, 3
          %v1837 = vsel %vm1339, %v1836, %v1835
          %v1838 = vrot.slane %v1769, 2
          %v1839 = vsel %vm1342, %v1838, %v1837
          %v1840 = vrot.slane %v1815, 1
          %v1841 = vsel %vm1345, %v1840, %v1839
          %v1843 = vpack.c.bf16 %v1841, %v1841
          %v1844 = vld [vmem:[%s5] sm:$0xf]
          %v1845 = vld [vmem:[%s5 + $0x4] sm:$0xf]
          %v1846 = vld [vmem:[%s5 + $0x8] sm:$0xf]
          %v1847 = vld [vmem:[%s5 + $0xc] sm:$0xf]
          %v1848 = vld [vmem:[%s5 + $0x10] sm:$0xf]
          %v1849 = vld [vmem:[%s5 + $0x14] sm:$0xf]
          %v1850 = vld [vmem:[%s5 + $0x18] sm:$0xf]
          %v1851 = vld [vmem:[%s5 + $0x1c] sm:$0xf]
          %v1852 = vld [vmem:[%s5 + $0x20] sm:$0xf]
          %v1853 = vld [vmem:[%s5 + $0x24] sm:$0xf]
          %v1854 = vld [vmem:[%s5 + $0x28] sm:$0xf]
          %v1855 = vld [vmem:[%s5 + $0x2c] sm:$0xf]
          %v1856 = vld [vmem:[%s5 + $0x30] sm:$0xf]
          %v1857 = vld [vmem:[%s5 + $0x34] sm:$0xf]
          %v1858 = vld [vmem:[%s5 + $0x38] sm:$0xf]
          %v1859 = vld [vmem:[%s5 + $0x3c] sm:$0xf]
          %v1860 = vld [vmem:[%s5 + $0x40] sm:$0xf]
          %v1861 = vld [vmem:[%s5 + $0x44] sm:$0xf]
          %v1862 = vld [vmem:[%s5 + $0x48] sm:$0xf]
          %v1863 = vld [vmem:[%s5 + $0x4c] sm:$0xf]
          %v1864 = vld [vmem:[%s5 + $0x50] sm:$0xf]
          %v1865 = vld [vmem:[%s5 + $0x54] sm:$0xf]
          %v1866 = vld [vmem:[%s5 + $0x58] sm:$0xf]
          %v1867 = vld [vmem:[%s5 + $0x5c] sm:$0xf]
          %v1868 = vld [vmem:[%s5 + $0x60] sm:$0xf]
          %v1869 = vld [vmem:[%s5 + $0x64] sm:$0xf]
          %v1870 = vld [vmem:[%s5 + $0x68] sm:$0xf]
          %v1871 = vld [vmem:[%s5 + $0x6c] sm:$0xf]
          %v1872 = vld [vmem:[%s5 + $0x70] sm:$0xf]
          %v1873 = vld [vmem:[%s5 + $0x74] sm:$0xf]
          %v1874 = vld [vmem:[%s5 + $0x78] sm:$0xf]
          %v1875 = vld [vmem:[%s5 + $0x7c] sm:$0xf]
          %v1876 = vld [vmem:[%s6] sm:$0x1]
          %v1878 = vlaneseq
          %v1879 = vshrl.u32 %v1878, 7
          %v1880 = vsub.s32 0, %v1879
          %v1881 = vrot.slane %v1876, %v1880
          %v1915 = vunpack.c.l.b16 %v1844
          %v1916 = vunpack.c.l.b16 %v1845
          %v1917 = vunpack.c.l.b16 %v1846
          %v1918 = vunpack.c.l.b16 %v1847
          %v1919 = vunpack.c.l.b16 %v1848
          %v1920 = vunpack.c.l.b16 %v1849
          %v1921 = vunpack.c.l.b16 %v1850
          %v1922 = vunpack.c.l.b16 %v1851
          %v1923 = vunpack.c.l.b16 %v1852
          %v1924 = vunpack.c.l.b16 %v1853
          %v1925 = vunpack.c.l.b16 %v1854
          %v1926 = vunpack.c.l.b16 %v1855
          %v1927 = vunpack.c.l.b16 %v1856
          %v1928 = vunpack.c.l.b16 %v1857
          %v1929 = vunpack.c.l.b16 %v1858
          %v1930 = vunpack.c.l.b16 %v1859
          %v1931 = vunpack.c.l.b16 %v1860
          %v1932 = vunpack.c.l.b16 %v1861
          %v1933 = vunpack.c.l.b16 %v1862
          %v1934 = vunpack.c.l.b16 %v1863
          %v1935 = vunpack.c.l.b16 %v1864
          %v1936 = vunpack.c.l.b16 %v1865
          %v1937 = vunpack.c.l.b16 %v1866
          %v1938 = vunpack.c.l.b16 %v1867
          %v1939 = vunpack.c.l.b16 %v1868
          %v1940 = vunpack.c.l.b16 %v1869
          %v1941 = vunpack.c.l.b16 %v1870
          %v1942 = vunpack.c.l.b16 %v1871
          %v1943 = vunpack.c.l.b16 %v1872
          %v1944 = vunpack.c.l.b16 %v1873
          %v1945 = vunpack.c.l.b16 %v1874
          %v1946 = vunpack.c.l.b16 %v1875
          %v1947 = vpack.c.b16 %v1916, %v1915
          %v1948 = vpack.c.b16 %v1918, %v1917
          %v1949 = vpack.c.b16 %v1920, %v1919
          %v1950 = vpack.c.b16 %v1922, %v1921
          %v1951 = vpack.c.b16 %v1924, %v1923
          %v1952 = vpack.c.b16 %v1926, %v1925
          %v1953 = vpack.c.b16 %v1928, %v1927
          %v1954 = vpack.c.b16 %v1930, %v1929
          %v1955 = vpack.c.b16 %v1932, %v1931
          %v1956 = vpack.c.b16 %v1934, %v1933
          %v1957 = vpack.c.b16 %v1936, %v1935
          %v1958 = vpack.c.b16 %v1938, %v1937
          %v1959 = vpack.c.b16 %v1940, %v1939
          %v1960 = vpack.c.b16 %v1942, %v1941
          %v1961 = vpack.c.b16 %v1944, %v1943
          %v1962 = vpack.c.b16 %v1946, %v1945
          %1979 = vmatprep.subr.bf16.mxu0 0
          %1980 = vmatpush1.bf16.msra.mxu0 %v1954
          %1981 = vmatprep.subr.bf16.mxu0 0
          %1982 = vmatpush1.bf16.msra.mxu0 %v1953
          %1983 = vmatprep.subr.bf16.mxu0 0
          %1984 = vmatpush1.bf16.msra.mxu0 %v1952
          %1985 = vmatprep.subr.bf16.mxu0 0
          %1986 = vmatpush1.bf16.msra.mxu0 %v1951
          %1987 = vmatprep.subr.bf16.mxu0 0
          %1988 = vmatpush1.bf16.msra.mxu0 %v1950
          %1989 = vmatprep.subr.bf16.mxu0 0
          %1990 = vmatpush1.bf16.msra.mxu0 %v1949
          %1991 = vmatprep.subr.bf16.mxu0 0
          %1992 = vmatpush1.bf16.msra.mxu0 %v1948
          %1993 = vmatprep.subr.bf16.mxu0 0
          %1994 = vmatpush1.bf16.msra.mxu0 %v1947
          %1995 = vmatprep.subr.bf16.mxu0 0
          %1996 = vmatpush2.bf16.msra.mxu0 %v1962
          %1997 = vmatprep.subr.bf16.mxu0 0
          %1998 = vmatpush2.bf16.msra.mxu0 %v1961
          %1999 = vmatprep.subr.bf16.mxu0 0
          %2000 = vmatpush2.bf16.msra.mxu0 %v1960
          %2001 = vmatprep.subr.bf16.mxu0 0
          %2002 = vmatpush2.bf16.msra.mxu0 %v1959
          %2003 = vmatprep.subr.bf16.mxu0 0
          %2004 = vmatpush2.bf16.msra.mxu0 %v1958
          %2005 = vmatprep.subr.bf16.mxu0 0
          %2006 = vmatpush2.bf16.msra.mxu0 %v1957
          %2007 = vmatprep.subr.bf16.mxu0 0
          %2008 = vmatpush2.bf16.msra.mxu0 %v1956
          %2009 = vmatprep.subr.bf16.mxu0 0
          %2010 = vmatpush2.bf16.msra.mxu0 %v1955
          %2011 = vmatprep.mubr.bf16.mxu0 %v1843
          %2012 = vmatmul.mubr.bf16.gmra.mxu0 %v916
          %v2013 = vpop.f32.mrf.mxu0
          %v2014 = vadd.f32 %v1881, %v2013
          %v2015 = vpop.f32.mrf.mxu0
          %v2016 = vpop.f32.mrf.mxu0
          %v2017 = vpop.f32.mrf.mxu0
          %2018 = vdwg.mxu0
          %v2019 = vtanh.pop %v2014
          %2020 = vst [vmem:[#allocation2] sm:$0xff] %v2019
        $region68: #{attn_decoder_forward.1} parent=55 // pred_fallthru
          _
        %v2021 = vld [vmem:[#allocation2] sm:$0xff]
        %v2022 = vpack.c.bf16 %v2021, %v2021
        %v2023 = vld [vmem:[%s353] sm:$0xf]
        %v2024 = vld [vmem:[%s353 + $0x4] sm:$0xf]
        %v2025 = vld [vmem:[%s353 + $0x8] sm:$0xf]
        %v2026 = vld [vmem:[%s353 + $0xc] sm:$0xf]
        %v2027 = vld [vmem:[%s353 + $0x10] sm:$0xf]
        %v2028 = vld [vmem:[%s353 + $0x14] sm:$0xf]
        %v2029 = vld [vmem:[%s353 + $0x18] sm:$0xf]
        %v2030 = vld [vmem:[%s353 + $0x1c] sm:$0xf]
        %v2031 = vld [vmem:[%s353 + $0x20] sm:$0xf]
        %v2032 = vld [vmem:[%s353 + $0x24] sm:$0xf]
        %v2033 = vld [vmem:[%s353 + $0x28] sm:$0xf]
        %v2034 = vld [vmem:[%s353 + $0x2c] sm:$0xf]
        %v2035 = vld [vmem:[%s353 + $0x30] sm:$0xf]
        %v2036 = vld [vmem:[%s353 + $0x34] sm:$0xf]
        %v2037 = vld [vmem:[%s353 + $0x38] sm:$0xf]
        %v2038 = vld [vmem:[%s353 + $0x3c] sm:$0xf]
        %v2039 = vld [vmem:[%s390] sm:$0x1]
        %v2041 = vlaneseq
        %v2042 = vshrl.u32 %v2041, 7
        %v2043 = vsub.s32 0, %v2042
        %v2044 = vrot.slane %v2039, %v2043
        %v2062 = vunpack.c.l.b16 %v2023
        %v2063 = vunpack.c.l.b16 %v2024
        %v2064 = vunpack.c.l.b16 %v2025
        %v2065 = vunpack.c.l.b16 %v2026
        %v2066 = vunpack.c.l.b16 %v2027
        %v2067 = vunpack.c.l.b16 %v2028
        %v2068 = vunpack.c.l.b16 %v2029
        %v2069 = vunpack.c.l.b16 %v2030
        %v2070 = vunpack.c.l.b16 %v2031
        %v2071 = vunpack.c.l.b16 %v2032
        %v2072 = vunpack.c.l.b16 %v2033
        %v2073 = vunpack.c.l.b16 %v2034
        %v2074 = vunpack.c.l.b16 %v2035
        %v2075 = vunpack.c.l.b16 %v2036
        %v2076 = vunpack.c.l.b16 %v2037
        %v2077 = vunpack.c.l.b16 %v2038
        %v2078 = vpack.c.b16 %v2063, %v2062
        %v2079 = vpack.c.b16 %v2065, %v2064
        %v2080 = vpack.c.b16 %v2067, %v2066
        %v2081 = vpack.c.b16 %v2069, %v2068
        %v2082 = vpack.c.b16 %v2071, %v2070
        %v2083 = vpack.c.b16 %v2073, %v2072
        %v2084 = vpack.c.b16 %v2075, %v2074
        %v2085 = vpack.c.b16 %v2077, %v2076
        %2094 = vmatprep.subr.bf16.mxu0 0
        %2095 = vmatpush1.bf16.msra.mxu0 %v2085
        %2096 = vmatprep.subr.bf16.mxu0 0
        %2097 = vmatpush1.bf16.msra.mxu0 %v2084
        %2098 = vmatprep.subr.bf16.mxu0 0
        %2099 = vmatpush1.bf16.msra.mxu0 %v2083
        %2100 = vmatprep.subr.bf16.mxu0 0
        %2101 = vmatpush1.bf16.msra.mxu0 %v2082
        %2102 = vmatprep.subr.bf16.mxu0 0
        %2103 = vmatpush1.bf16.msra.mxu0 %v2081
        %2104 = vmatprep.subr.bf16.mxu0 0
        %2105 = vmatpush1.bf16.msra.mxu0 %v2080
        %2106 = vmatprep.subr.bf16.mxu0 0
        %2107 = vmatpush1.bf16.msra.mxu0 %v2079
        %2108 = vmatprep.subr.bf16.mxu0 0
        %2109 = vmatpush1.bf16.msra.mxu0 %v2078
        %2110 = vmatprep.subr.bf16.mxu0 0
        %2111 = vmatpush2.bf16.msra.mxu0 0
        %2112 = vmatprep.subr.bf16.mxu0 0
        %2113 = vmatpush2.bf16.msra.mxu0 0
        %2114 = vmatprep.subr.bf16.mxu0 0
        %2115 = vmatpush2.bf16.msra.mxu0 0
        %2116 = vmatprep.subr.bf16.mxu0 0
        %2117 = vmatpush2.bf16.msra.mxu0 0
        %2118 = vmatprep.subr.bf16.mxu0 0
        %2119 = vmatpush2.bf16.msra.mxu0 0
        %2120 = vmatprep.subr.bf16.mxu0 0
        %2121 = vmatpush2.bf16.msra.mxu0 0
        %2122 = vmatprep.subr.bf16.mxu0 0
        %2123 = vmatpush2.bf16.msra.mxu0 0
        %2124 = vmatprep.subr.bf16.mxu0 0
        %2125 = vmatpush2.bf16.msra.mxu0 0
        %2126 = vmatprep.mubr.bf16.mxu0 0
        %2127 = vmatmul.mubr.bf16.gmra.mxu0 %v2022
        %v2128 = vpop.f32.mrf.mxu0
        %v2129 = vadd.f32 %v2044, %v2128
        %v2130 = vpop.f32.mrf.mxu0
        %v2131 = vpop.f32.mrf.mxu0
        %v2132 = vpop.f32.mrf.mxu0
        %2133 = vdwg.mxu0
        %s2134 = smul.u32 %s26, 8
        %s2135 = scalar_lea.vmem [#allocation3], %s2134
        %2136 = vst [vmem:[%s2135] sm:$0xff] %v2129
        %p2137 = scmp.eq.s32.totalorder %s26, 1
        // Predicated region
        $region69: #{attn_decoder_forward.1} parent=55 // pred_check
          %p2138 = pneg %p2137
        $region70: #{attn_decoder_forward.1} parent=55 // pred_check_branch
          %2140 = sbr.rel (%p2138) target = $region72
        $region71: #{attn_decoder_forward.1} parent=55 // pred_region
          %v2141 = vld [vmem:[#allocation3] sm:$0xff]
          %v2142 = vld [vmem:[#allocation3 + $0x8] sm:$0xff]
          %2143 = vmax.xlane.f32.xlu0 %v2141
          %v2144 = vpop.xlane.xlu0 %2143
          %2145 = vmax.xlane.f32.xlu0 %v2142
          %v2146 = vpop.xlane.xlu0 %2145
          %v2147 = vmax.f32 %v2144, %v2146
          %v2148 = vsub.f32 %v2141, %v2147
          %v2149 = vsub.f32 %v2142, %v2147
          %v2150 = vmul.f32 %v2148, 1.442695
          %v2151 = vpow.pop %v2150
          %v2152 = vmul.f32 %v2149, 1.442695
          %v2153 = vpow.pop %v2152
          %2154 = vadd.xlane.f32.xlu0 %v2151
          %v2155 = vpop.xlane.xlu0 %2154
          %2156 = vadd.xlane.f32.xlu0 %v2153
          %v2157 = vpop.xlane.xlu0 %2156
          %v2158 = vadd.f32 %v2155, %v2157
          %v2159 = vrcp.pop %v2158
          %v2160 = vmul.f32 %v2151, %v2159
          %v2161 = vmul.f32 %v2153, %v2159
          %2162 = vst [vmem:[%s9] sm:$0xff] %v2160
          %2163 = vst [vmem:[%s9 + $0x8] sm:$0xff] %v2161
        $region72: #{attn_decoder_forward.1} parent=55 // pred_fallthru
          _
        // Predicated region
        $region73: #{attn_decoder_forward.1} parent=55 // pred_check
          %p2164 = pneg %p238
        $region74: #{attn_decoder_forward.1} parent=55 // pred_check_branch
          %2166 = sbr.rel (%p2164) target = $region76
        $region75: #{attn_decoder_forward.1} parent=55 // pred_region
          _
        $region76: #{attn_decoder_forward.1} parent=55 // pred_fallthru
          _
        // Predicated region
        $region77: #{attn_decoder_forward.1} parent=55 // pred_check
          %p2167 = pneg %p259
        $region78: #{attn_decoder_forward.1} parent=55 // pred_check_branch
          %2169 = sbr.rel (%p2167) target = $region80
        $region79: #{attn_decoder_forward.1} parent=55 // pred_region
          _
        $region80: #{attn_decoder_forward.1} parent=55 // pred_fallthru
          _
        // Predicated region
        $region81: #{attn_decoder_forward.1} parent=55 // pred_check
          %p2170 = pneg %p238
        $region82: #{attn_decoder_forward.1} parent=55 // pred_check_branch
          %2172 = sbr.rel (%p2170) target = $region84
        $region83: #{attn_decoder_forward.1} parent=55 // pred_region
          _
        $region84: #{attn_decoder_forward.1} parent=55 // pred_fallthru
          _
        // Predicated region
        $region85: #{attn_decoder_forward.1} parent=55 // pred_check
          %p2173 = pneg %p259
        $region86: #{attn_decoder_forward.1} parent=55 // pred_check_branch
          %2175 = sbr.rel (%p2173) target = $region88
        $region87: #{attn_decoder_forward.1} parent=55 // pred_region
          _
        $region88: #{attn_decoder_forward.1} parent=55 // pred_fallthru
          _
      $region56: #{attn_decoder_forward.1} parent=5 // pred_fallthru
        _
      %p2176 = scmp.le.s32.totalorder 2, %s21
      // Predicated region
      $region89: #{attn_decoder_forward.1} parent=5 // pred_check
        %p2177 = pneg %p2176
      $region90: #{attn_decoder_forward.1} parent=5 // pred_check_branch
        %2179 = sbr.rel (%p2177) target = $region92
      $region91: #{attn_decoder_forward.1} parent=5 // pred_region
        %s2180 = ssub.s32 %s21, 2
      $region92: #{attn_decoder_forward.1} parent=5 // pred_fallthru
        _
    $region6: #{attn_decoder_forward.1} parent=1 // loop_footer
      %s25 = sadd.s32 1, %s21
    $region7: #{attn_decoder_forward.1} parent=1 // loop_footer_branch
      %20 = sbr.rel target = $region3
    $region8: #{attn_decoder_forward.1} parent=1 // loop_exit
      _
    %2181 = vsyncpa [#allocation5], 1
    %s2182 = scalar_lea.sflag [#allocation5], 1
    %2183 = vsyncpa %s2182, 1
    %2184 = vsyncpa [#allocation7], 1
    %s2185 = scalar_lea.sflag [#allocation7], 1
    %2186 = vsyncpa %s2185, 1

</llo_original>
